<compile_context>
chip_gen: v6e
topology: v6e:2x2x1
jax: 0.10.0
libtpu: 0.0.40
codegen_flags: <defaults>
</compile_context>

<pallas_src>
import functools

import jax
import jax.numpy as jnp
from jax.experimental import pallas as pl
from jax.experimental.pallas import tpu as pltpu

_OUT_W = 128  # lane-dense output slab width (offence cols 0:4, action 4:12)


# ----------------------------- kernel --------------------------------------


def _normalize(x, eps=1e-5):
    """LayerNorm statistics only (affine is folded into the next Linear)."""
    mu = jnp.mean(x, axis=-1, keepdims=True)
    var = jnp.mean((x - mu) ** 2, axis=-1, keepdims=True)
    return (x - mu) * jax.lax.rsqrt(var + eps)


def mv_fused_kernel(x_ref, wb_ref, w1_ref, w2_ref, wh1_ref, wh2_ref, vec_ref,
                    out_ref, feats_acc, pooled_acc, *, V, agr_type):
    v = pl.program_id(0)          # view index (outer)
    k = pl.program_id(1)          # backbone K tile (inner / reduction)
    nk = pl.num_programs(1)
    F = feats_acc.shape[-1]
    out_w = out_ref.shape[-1]
    bf16 = jnp.bfloat16

    @pl.when(k == 0)
    def _():
        feats_acc[...] = jnp.zeros_like(feats_acc)

    # Backbone matmul tile for view v: f32 x tile cast to bf16 in-kernel (VPU,
    # hidden under the MXU), bf16 weights, f32 accumulate in VMEM scratch.
    feats_acc[...] += jnp.dot(x_ref[...].astype(bf16), wb_ref[...],
                              preferred_element_type=jnp.float32)

    @pl.when(k == nk - 1)
    def _():
        vec = vec_ref[...]                                       # (8, 2F) f32
        # Backbone bias + ReLU for this view.
        feats = jnp.maximum(feats_acc[...] + vec[0:1, :F], 0.0)  # (B, F)

        # --- view pooling folded into a whole-ref VPU accumulator ---
        @pl.when(v == 0)
        def _():
            pooled_acc[...] = feats

        @pl.when(v > 0)
        def _():
            if agr_type == "max":
                pooled_acc[...] = jnp.maximum(pooled_acc[...], feats)
            else:
                pooled_acc[...] = pooled_acc[...] + feats

        # --- heads, only after the last view ---
        @pl.when(v == V - 1)
        def _():
            pooled = pooled_acc[...]
            if agr_type != "max":
                pooled = pooled * (1.0 / V)

            # inter: LN (affine folded into w1) -> Linear -> Linear (bf16 MXU).
            h = jnp.dot(_normalize(pooled).astype(bf16), w1_ref[...],
                        preferred_element_type=jnp.float32) + vec[1:2, :F]
            inter1 = jnp.dot(h.astype(bf16), w2_ref[...],
                             preferred_element_type=jnp.float32) + vec[2:3, :F]

            # fc_offence & fc_action: shared LN stats, merged (F, 2F) matmul,
            # packed lane-dense (2F, 128) output weight.
            xhat = _normalize(inter1)                            # (B, F)
            h2 = jnp.dot(xhat.astype(bf16), wh1_ref[...],
                         preferred_element_type=jnp.float32) + vec[3:4, :]
            out = jnp.dot(h2.astype(bf16), wh2_ref[...],
                          preferred_element_type=jnp.float32) + vec[4:5, :out_w]
            out_ref[...] = out.astype(out_ref.dtype)             # (B, 128)


# ----------------------------- packing (once per weight update) --------------


def pack_mv_params(params):
    """Fold LN affines into the following Linears, merge/pack head weights,
    stack bias rows, cast MXU weights to bf16.  Run ONCE per weight update."""
    f32, bf16 = jnp.float32, jnp.bfloat16
    F = params["w_back"].shape[1]

    packed = {"wb": params["w_back"].astype(bf16)}

    # LN-affine folds (exact in f32):  y = LN(x)*g + b ; y@W = LN(x)@(g.T*W) + b@W
    packed["w1"] = (params["ln1_g"].T * params["w1"]).astype(bf16)       # (F, F)
    b1 = params["ln1_b"] @ params["w1"] + params["b1"]                   # (1, F)
    packed["w2"] = params["w2"].astype(bf16)                             # (F, F)

    packed["wh1"] = jnp.concatenate([params["lno_g"].T * params["wo1"],
                                     params["lna_g"].T * params["wa1"]],
                                    axis=1).astype(bf16)                 # (F, 2F)
    hb_off = params["lno_b"] @ params["wo1"] + params["bo1"]             # (1, F)
    hb_act = params["lna_b"] @ params["wa1"] + params["ba1"]             # (1, F)

    # Pack the two tiny output Linears into one lane-dense (2F, 128) weight.
    wh2 = jnp.zeros((2 * F, _OUT_W), f32)
    wh2 = wh2.at[:F, 0:4].set(params["wo2"]).at[F:, 4:12].set(params["wa2"])
    packed["wh2"] = wh2.astype(bf16)

    out_b = jnp.zeros((1, _OUT_W), f32)
    out_b = out_b.at[:, 0:4].set(params["bo2"]).at[:, 4:12].set(params["ba2"])

    # All bias rows stacked into a single (8, 2F) f32 input (one DMA).
    # row 0: backbone bias | row 1: folded b1 | row 2: b2
    # row 3: [hb_off | hb_act] (built here, NOT concatenated inside the kernel)
    # row 4: packed output bias (offence 0:4, action 4:12)
    vec = jnp.zeros((8, 2 * F), f32)
    vec = vec.at[0, :F].set(params["b_back"][0])
    vec = vec.at[1, :F].set(b1[0])
    vec = vec.at[2, :F].set(params["b2"][0])
    vec = vec.at[3, :].set(jnp.concatenate([hb_off, hb_act], axis=1)[0])
    vec = vec.at[4, :_OUT_W].set(out_b[0])
    packed["vec"] = vec
    return packed


# ----------------------------- wrapper --------------------------------------


def _pick_tk(Cin, F, B):
    """Single K step when w_back is small (per-step overhead dominates any HBM
    streaming benefit); otherwise the largest 128-multiple divisor of Cin whose
    double-buffered x/w_back tiles stay under ~8 MiB (v7x 64 MiB VMEM safe)."""
    if Cin * F * 2 <= (4 << 20):
        return Cin
    budget = 8 << 20
    best = 128
    for t in range(128, Cin + 1, 128):
        if Cin % t == 0 and 2 * (B * t * 4 + t * F * 2) <= budget:
            best = t
    return best


def mv_aggregate_forward(mvimages, packed, agr_type="max"):
    B, V, C, D, H, W = mvimages.shape
    Cin = C * D * H * W
    F = packed["w1"].shape[0]
    assert F % 128 == 0 and F >= _OUT_W
    # TODO(synk): the synthetic Linear backbone needs a lane-aligned Cin; the
    # real `model` is an arbitrary 3D CNN and is out of scope for this kernel.
    assert Cin % 128 == 0

    # Pure reshape: no transpose, no pad, no cast.  View v, K-tile k reads
    # columns [v*Cin + k*tk, ...) selected by the index_map below.
    x = mvimages.reshape(B, V * Cin)

    tk = _pick_tk(Cin, F, B)
    k_tiles = Cin // tk

    # K/V-invariant head inputs: fetched once (constant index_map).  Single-
    # buffer them when the K loop is long or F is large so they don't double
    # their VMEM footprint / delay the pipeline.
    stream_heads = (k_tiles > 1) or (F >= 512)

    def _const_spec(shape):
        if stream_heads:
            return pl.BlockSpec(shape, lambda v, k: (0, 0),
                                pipeline_mode=pl.Buffered(1))
        return pl.BlockSpec(shape, lambda v, k: (0, 0))

    # VMEM budget estimate (bytes) -> vmem_limit with headroom, capped for v7x.
    head_buf = 1 if stream_heads else 2
    est = (2 * (B * tk * 4 + tk * F * 2)                     # x + w_back tiles (x2 buf)
           + head_buf * (2 * F * F * 2 + F * 2 * F * 2       # w1, w2, wh1 (bf16)
                         + 2 * F * _OUT_W * 2 + 8 * 2 * F * 4)  # wh2 (bf16), vec (f32)
           + 2 * B * F * 4 + 2 * B * _OUT_W * 4)             # scratch accs + out block
    vmem_limit = int(min(max(4 * est, 8 << 20), 60 << 20))

    kernel = functools.partial(mv_fused_kernel, V=V, agr_type=agr_type)

    out = pl.pallas_call(
        kernel,
        out_shape=jax.ShapeDtypeStruct((B, _OUT_W), jnp.float32),
        grid_spec=pltpu.PrefetchScalarGridSpec(
            num_scalar_prefetch=0,
            grid=(V, k_tiles),                       # V outer, K inner (reduction last)
            in_specs=[
                # x tile: (B, tk) f32 straight from HBM, view/K selected here.
                pl.BlockSpec((B, tk), lambda v, k: (0, v * k_tiles + k)),
                # w_back K tile (bf16).
                pl.BlockSpec((tk, F), lambda v, k: (k, 0)),
                _const_spec((F, F)),                 # w1 (LN folded, bf16)
                _const_spec((F, F)),                 # w2 (bf16)
                _const_spec((F, 2 * F)),             # merged head W1 (bf16)
                _const_spec((2 * F, _OUT_W)),        # packed head W2 (bf16)
                _const_spec((8, 2 * F)),             # stacked bias rows (f32)
            ],
            out_specs=pl.BlockSpec((B, _OUT_W), lambda v, k: (0, 0)),
            scratch_shapes=[pltpu.VMEM((B, F), jnp.float32),   # per-view feats acc
                            pltpu.VMEM((B, F), jnp.float32)],  # view-pool acc
        ),
        compiler_params=pltpu.CompilerParams(
            # Both axes are reductions into VMEM accumulators.
            # TODO(synk): for large B add a leading "parallel" batch axis so
            # v7x's 2 TensorCores both get work, and re-budget for 64 MiB VMEM.
            dimension_semantics=("arbitrary", "arbitrary"),
            vmem_limit_bytes=vmem_limit,
        ),
    )(x, packed["wb"], packed["w1"], packed["w2"],
      packed["wh1"], packed["wh2"], packed["vec"])

    return out[:, 0:4], out[:, 4:12]


# ----------------------------- reference ------------------------------------


def mv_aggregate_reference(mvimages, params, agr_type="max"):
    B, V, C, D, H, W = mvimages.shape
    Cin = C * D * H * W
    x = mvimages.reshape(B * V, Cin).astype(jnp.float32)
    feats = jnp.maximum(x @ params["w_back"] + params["b_back"], 0.0)
    feats = feats.reshape(B, V, -1)
    pooled = jnp.max(feats, axis=1) if agr_type == "max" else jnp.mean(feats, axis=1)

    def ln(x, g, b):
        mu = jnp.mean(x, axis=-1, keepdims=True)
        var = jnp.mean((x - mu) ** 2, axis=-1, keepdims=True)
        return (x - mu) / jnp.sqrt(var + 1e-5) * g + b

    h = ln(pooled, params["ln1_g"], params["ln1_b"])
    h = h @ params["w1"] + params["b1"]
    inter1 = h @ params["w2"] + params["b2"]

    ho = ln(inter1, params["lno_g"], params["lno_b"])
    ho = ho @ params["wo1"] + params["bo1"]
    off = ho @ params["wo2"] + params["bo2"]

    ha = ln(inter1, params["lna_g"], params["lna_b"])
    ha = ha @ params["wa1"] + params["ba1"]
    act = ha @ params["wa2"] + params["ba2"]
    return off, act


# ----------------------------- params / main --------------------------------


def _init_params(key, Cin, F):
    ks = jax.random.split(key, 16)
    s = 0.02
    p = {
        "w_back": s * jax.random.normal(ks[0], (Cin, F), jnp.float32),
        "b_back": s * jax.random.normal(ks[1], (1, F), jnp.float32),
        # inter
        "ln1_g": 1.0 + s * jax.random.normal(ks[2], (1, F), jnp.float32),
        "ln1_b": s * jax.random.normal(ks[3], (1, F), jnp.float32),
        "w1": s * jax.random.normal(ks[4], (F, F), jnp.float32),
        "b1": s * jax.random.normal(ks[5], (1, F), jnp.float32),
        "w2": s * jax.random.normal(ks[6], (F, F), jnp.float32),
        "b2": s * jax.random.normal(ks[7], (1, F), jnp.float32),
        # fc_offence (F -> F -> 4)
        "lno_g": 1.0 + s * jax.random.normal(ks[8], (1, F), jnp.float32),
        "lno_b": s * jax.random.normal(ks[9], (1, F), jnp.float32),
        "wo1": s * jax.random.normal(ks[10], (F, F), jnp.float32),
        "bo1": s * jax.random.normal(ks[11], (1, F), jnp.float32),
        "wo2": s * jax.random.normal(ks[12], (F, 4), jnp.float32),
        "bo2": s * jax.random.normal(ks[13], (1, 4), jnp.float32),
        # fc_action (F -> F -> 8)
        "lna_g": 1.0 + s * jax.random.normal(ks[14], (1, F), jnp.float32),
        "lna_b": s * jax.random.normal(ks[15], (1, F), jnp.float32),
    }
    k2 = jax.random.split(jax.random.fold_in(key, 1), 4)
    p["wa1"] = s * jax.random.normal(k2[0], (F, F), jnp.float32)
    p["ba1"] = s * jax.random.normal(k2[1], (1, F), jnp.float32)
    p["wa2"] = s * jax.random.normal(k2[2], (F, 8), jnp.float32)
    p["ba2"] = s * jax.random.normal(k2[3], (1, 8), jnp.float32)
    return p


if __name__ == "__main__":
    key = jax.random.PRNGKey(0)
    B, V, C, D, H, W = 2, 3, 4, 2, 8, 8        # small multi-view clip batch
    F = 128                                     # feat_dim (lane-aligned)
    Cin = C * D * H * W                         # 512

    k_x, k_p = jax.random.split(key)
    mvimages = jax.random.normal(k_x, (B, V, C, D, H, W), jnp.float32)
    params = _init_params(k_p, Cin, F)

    # Weight folding / packing: ONCE per weight update, not per forward.
    packed = pack_mv_params(params)
    jax.block_until_ready(packed)

    off, act = mv_aggregate_forward(mvimages, packed, agr_type="max")
    jax.block_until_ready((off, act))

    off_ref, act_ref = mv_aggregate_reference(mvimages, params, agr_type="max")
    assert off.shape == (B, 4) and act.shape == (B, 8)
    # Tolerance accounts for bf16 backbone + head matmuls (f32 accumulate,
    # f32 biases); measured error is a few 1e-3, reference is full f32.
    assert jnp.allclose(off, off_ref, atol=2e-2, rtol=2e-2)
    assert jnp.allclose(act, act_ref, atol=2e-2, rtol=2e-2)

    print("KERNEL_OK")
</pallas_src>

<mosaic_0001>
module attributes {stable_mosaic.version = 11 : i64} {
  func.func @mv_fused_kernel(%arg0: i32, %arg1: i32, %arg2: memref<2x512xf32, #tpu.memory_space<vmem>>, %arg3: memref<512x128xbf16, #tpu.memory_space<vmem>>, %arg4: memref<128x128xbf16, #tpu.memory_space<vmem>>, %arg5: memref<128x128xbf16, #tpu.memory_space<vmem>>, %arg6: memref<128x256xbf16, #tpu.memory_space<vmem>>, %arg7: memref<256x128xbf16, #tpu.memory_space<vmem>>, %arg8: memref<8x256xf32, #tpu.memory_space<vmem>>, %arg9: memref<2x128xf32, #tpu.memory_space<vmem>>, %arg10: memref<2x128xf32, #tpu.memory_space<vmem>>, %arg11: memref<2x128xf32, #tpu.memory_space<vmem>>) attributes {dimension_semantics = [#tpu.dimension_semantics<arbitrary>, #tpu.dimension_semantics<arbitrary>], iteration_bounds = array<i64: 3, 1>, scalar_prefetch = 0 : i64, scratch_operands = 2 : i64, tpu.core_type = #tpu.core_type<tc>, window_params = [{transform_indices = @transform_0, window_bounds = array<i64: 2, 512>}, {transform_indices = @transform_1, window_bounds = array<i64: 512, 128>}, {pipeline_mode = #tpu.pipeline_mode<synchronous>, transform_indices = @transform_2, window_bounds = array<i64: 128, 128>}, {pipeline_mode = #tpu.pipeline_mode<synchronous>, transform_indices = @transform_3, window_bounds = array<i64: 128, 128>}, {pipeline_mode = #tpu.pipeline_mode<synchronous>, transform_indices = @transform_4, window_bounds = array<i64: 128, 256>}, {pipeline_mode = #tpu.pipeline_mode<synchronous>, transform_indices = @transform_5, window_bounds = array<i64: 256, 128>}, {pipeline_mode = #tpu.pipeline_mode<synchronous>, transform_indices = @transform_6, window_bounds = array<i64: 8, 256>}, {pipeline_mode = #tpu.pipeline_mode<synchronous>, transform_indices = @transform_7, window_bounds = array<i64: 2, 128>}]} {
    %c0_i32 = arith.constant 0 : i32
    %0 = arith.cmpi eq, %arg1, %c0_i32 : i32
    %1 = arith.extui %0 : i1 to i32
    %c0_i32_0 = arith.constant 0 : i32
    %2 = arith.cmpi ne, %1, %c0_i32_0 : i32
    scf.if %2 {
      %cst_10 = arith.constant 0.000000e+00 : f32
      %13 = vector.broadcast %cst_10 : f32 to vector<2x128xf32>
      %c0_11 = arith.constant 0 : index
      %c0_12 = arith.constant 0 : index
      %14 = vector.load %arg10[%c0_11, %c0_12] : memref<2x128xf32, #tpu.memory_space<vmem>>, vector<2x128xf32>
      tpu.vector_store %arg10[%c0_11, %c0_12], %13 {strides = array<i32>} : memref<2x128xf32, #tpu.memory_space<vmem>>, vector<2x128xf32>,
    } else {
    }
    %c0 = arith.constant 0 : index
    %c0_1 = arith.constant 0 : index
    %3 = vector.load %arg10[%c0, %c0_1] : memref<2x128xf32, #tpu.memory_space<vmem>>, vector<2x128xf32>
    %c0_2 = arith.constant 0 : index
    %c0_3 = arith.constant 0 : index
    %4 = vector.load %arg2[%c0_2, %c0_3] : memref<2x512xf32, #tpu.memory_space<vmem>>, vector<2x512xf32>
    %5 = arith.truncf %4 : vector<2x512xf32> to vector<2x512xbf16>
    %c0_4 = arith.constant 0 : index
    %c0_5 = arith.constant 0 : index
    %6 = vector.load %arg3[%c0_4, %c0_5] : memref<512x128xbf16, #tpu.memory_space<vmem>>, vector<512x128xbf16>
    %cst = arith.constant dense<0.000000e+00> : vector<2x128xf32>
    %7 = tpu.matmul %5, %6, %cst {dimension_numbers = #tpu.dot_dimension_numbers<[1], [0], [0], [1], [0, 0, 1, 1], [], []>} : vector<2x512xbf16>, vector<512x128xbf16>, vector<2x128xf32> -> vector<2x128xf32>
    %8 = arith.addf %3, %7 : vector<2x128xf32>
    %c0_6 = arith.constant 0 : index
    %c0_7 = arith.constant 0 : index
    %9 = vector.load %arg10[%c0_6, %c0_7] : memref<2x128xf32, #tpu.memory_space<vmem>>, vector<2x128xf32>
    tpu.vector_store %arg10[%c0_6, %c0_7], %8 {strides = array<i32>} : memref<2x128xf32, #tpu.memory_space<vmem>>, vector<2x128xf32>,
    %c0_i32_8 = arith.constant 0 : i32
    %10 = arith.cmpi eq, %arg1, %c0_i32_8 : i32
    %11 = arith.extui %10 : i1 to i32
    %c0_i32_9 = arith.constant 0 : i32
    %12 = arith.cmpi ne, %11, %c0_i32_9 : i32
    scf.if %12 {
      %c0_10 = arith.constant 0 : index
      %c0_11 = arith.constant 0 : index
      %13 = vector.load %arg8[%c0_10, %c0_11] : memref<8x256xf32, #tpu.memory_space<vmem>>, vector<8x256xf32>
      %c0_12 = arith.constant 0 : index
      %c0_13 = arith.constant 0 : index
      %14 = vector.load %arg10[%c0_12, %c0_13] : memref<2x128xf32, #tpu.memory_space<vmem>>, vector<2x128xf32>
      %15 = vector.extract_strided_slice %13 {offsets = [0, 0], sizes = [1, 128], strides = [1, 1]} : vector<8x256xf32> to vector<1x128xf32>
      %16 = vector.broadcast %15 : vector<1x128xf32> to vector<2x128xf32>
      %17 = arith.addf %14, %16 : vector<2x128xf32>
      %cst_14 = arith.constant 0.000000e+00 : f32
      %18 = vector.broadcast %cst_14 : f32 to vector<2x128xf32>
      %19 = arith.maximumf %17, %18 : vector<2x128xf32>
      %c0_i32_15 = arith.constant 0 : i32
      %20 = arith.cmpi eq, %arg0, %c0_i32_15 : i32
      %21 = arith.extui %20 : i1 to i32
      %c0_i32_16 = arith.constant 0 : i32
      %22 = arith.cmpi ne, %21, %c0_i32_16 : i32
      scf.if %22 {
        %c0_20 = arith.constant 0 : index
        %c0_21 = arith.constant 0 : index
        %29 = vector.load %arg11[%c0_20, %c0_21] : memref<2x128xf32, #tpu.memory_space<vmem>>, vector<2x128xf32>
        tpu.vector_store %arg11[%c0_20, %c0_21], %19 {strides = array<i32>} : memref<2x128xf32, #tpu.memory_space<vmem>>, vector<2x128xf32>,
      } else {
      }
      %c0_i32_17 = arith.constant 0 : i32
      %23 = arith.cmpi sgt, %arg0, %c0_i32_17 : i32
      %24 = arith.extui %23 : i1 to i32
      %c0_i32_18 = arith.constant 0 : i32
      %25 = arith.cmpi ne, %24, %c0_i32_18 : i32
      scf.if %25 {
        %c0_20 = arith.constant 0 : index
        %c0_21 = arith.constant 0 : index
        %29 = vector.load %arg11[%c0_20, %c0_21] : memref<2x128xf32, #tpu.memory_space<vmem>>, vector<2x128xf32>
        %30 = arith.maximumf %29, %19 : vector<2x128xf32>
        %c0_22 = arith.constant 0 : index
        %c0_23 = arith.constant 0 : index
        %31 = vector.load %arg11[%c0_22, %c0_23] : memref<2x128xf32, #tpu.memory_space<vmem>>, vector<2x128xf32>
        tpu.vector_store %arg11[%c0_22, %c0_23], %30 {strides = array<i32>} : memref<2x128xf32, #tpu.memory_space<vmem>>, vector<2x128xf32>,
      } else {
      }
      %c2_i32 = arith.constant 2 : i32
      %26 = arith.cmpi eq, %arg0, %c2_i32 : i32
      %27 = arith.extui %26 : i1 to i32
      %c0_i32_19 = arith.constant 0 : i32
      %28 = arith.cmpi ne, %27, %c0_i32_19 : i32
      scf.if %28 {
        %c0_20 = arith.constant 0 : index
        %c0_21 = arith.constant 0 : index
        %29 = vector.load %arg11[%c0_20, %c0_21] : memref<2x128xf32, #tpu.memory_space<vmem>>, vector<2x128xf32>
        %cst_22 = arith.constant dense<0.000000e+00> : vector<2xf32>
        %30 = vector.multi_reduction <add>, %29, %cst_22 [1] : vector<2x128xf32> to vector<2xf32>
        %31 = vector.shape_cast %30 : vector<2xf32> to vector<2x1xf32>
        %cst_23 = arith.constant 1.280000e+02 : f32
        %32 = vector.broadcast %cst_23 : f32 to vector<2x1xf32>
        %33 = arith.divf %31, %32 : vector<2x1xf32>
        %34 = vector.broadcast %33 : vector<2x1xf32> to vector<2x128xf32>
        %35 = arith.subf %29, %34 : vector<2x128xf32>
        %36 = arith.mulf %35, %35 : vector<2x128xf32>
        %cst_24 = arith.constant dense<0.000000e+00> : vector<2xf32>
        %37 = vector.multi_reduction <add>, %36, %cst_24 [1] : vector<2x128xf32> to vector<2xf32>
        %38 = vector.shape_cast %37 : vector<2xf32> to vector<2x1xf32>
        %cst_25 = arith.constant 1.280000e+02 : f32
        %39 = vector.broadcast %cst_25 : f32 to vector<2x1xf32>
        %40 = arith.divf %38, %39 : vector<2x1xf32>
        %41 = vector.broadcast %33 : vector<2x1xf32> to vector<2x128xf32>
        %42 = arith.subf %29, %41 : vector<2x128xf32>
        %cst_26 = arith.constant 9.99999974E-6 : f32
        %43 = vector.broadcast %cst_26 : f32 to vector<2x1xf32>
        %44 = arith.addf %40, %43 : vector<2x1xf32>
        %45 = math.rsqrt %44 : vector<2x1xf32>
        %46 = vector.broadcast %45 : vector<2x1xf32> to vector<2x128xf32>
        %47 = arith.mulf %42, %46 : vector<2x128xf32>
        %48 = arith.truncf %47 : vector<2x128xf32> to vector<2x128xbf16>
        %c0_27 = arith.constant 0 : index
        %c0_28 = arith.constant 0 : index
        %49 = vector.load %arg4[%c0_27, %c0_28] : memref<128x128xbf16, #tpu.memory_space<vmem>>, vector<128x128xbf16>
        %cst_29 = arith.constant dense<0.000000e+00> : vector<2x128xf32>
        %50 = tpu.matmul %48, %49, %cst_29 {dimension_numbers = #tpu.dot_dimension_numbers<[1], [0], [0], [1], [0, 0, 1, 1], [], []>} : vector<2x128xbf16>, vector<128x128xbf16>, vector<2x128xf32> -> vector<2x128xf32>
        %51 = vector.extract_strided_slice %13 {offsets = [1, 0], sizes = [1, 128], strides = [1, 1]} : vector<8x256xf32> to vector<1x128xf32>
        %52 = vector.broadcast %51 : vector<1x128xf32> to vector<2x128xf32>
        %53 = arith.addf %50, %52 : vector<2x128xf32>
        %54 = arith.truncf %53 : vector<2x128xf32> to vector<2x128xbf16>
        %c0_30 = arith.constant 0 : index
        %c0_31 = arith.constant 0 : index
        %55 = vector.load %arg5[%c0_30, %c0_31] : memref<128x128xbf16, #tpu.memory_space<vmem>>, vector<128x128xbf16>
        %cst_32 = arith.constant dense<0.000000e+00> : vector<2x128xf32>
        %56 = tpu.matmul %54, %55, %cst_32 {dimension_numbers = #tpu.dot_dimension_numbers<[1], [0], [0], [1], [0, 0, 1, 1], [], []>} : vector<2x128xbf16>, vector<128x128xbf16>, vector<2x128xf32> -> vector<2x128xf32>
        %57 = vector.extract_strided_slice %13 {offsets = [2, 0], sizes = [1, 128], strides = [1, 1]} : vector<8x256xf32> to vector<1x128xf32>
        %58 = vector.broadcast %57 : vector<1x128xf32> to vector<2x128xf32>
        %59 = arith.addf %56, %58 : vector<2x128xf32>
        %cst_33 = arith.constant dense<0.000000e+00> : vector<2xf32>
        %60 = vector.multi_reduction <add>, %59, %cst_33 [1] : vector<2x128xf32> to vector<2xf32>
        %61 = vector.shape_cast %60 : vector<2xf32> to vector<2x1xf32>
        %cst_34 = arith.constant 1.280000e+02 : f32
        %62 = vector.broadcast %cst_34 : f32 to vector<2x1xf32>
        %63 = arith.divf %61, %62 : vector<2x1xf32>
        %64 = vector.broadcast %63 : vector<2x1xf32> to vector<2x128xf32>
        %65 = arith.subf %59, %64 : vector<2x128xf32>
        %66 = arith.mulf %65, %65 : vector<2x128xf32>
        %cst_35 = arith.constant dense<0.000000e+00> : vector<2xf32>
        %67 = vector.multi_reduction <add>, %66, %cst_35 [1] : vector<2x128xf32> to vector<2xf32>
        %68 = vector.shape_cast %67 : vector<2xf32> to vector<2x1xf32>
        %cst_36 = arith.constant 1.280000e+02 : f32
        %69 = vector.broadcast %cst_36 : f32 to vector<2x1xf32>
        %70 = arith.divf %68, %69 : vector<2x1xf32>
        %71 = vector.broadcast %63 : vector<2x1xf32> to vector<2x128xf32>
        %72 = arith.subf %59, %71 : vector<2x128xf32>
        %cst_37 = arith.constant 9.99999974E-6 : f32
        %73 = vector.broadcast %cst_37 : f32 to vector<2x1xf32>
        %74 = arith.addf %70, %73 : vector<2x1xf32>
        %75 = math.rsqrt %74 : vector<2x1xf32>
        %76 = vector.broadcast %75 : vector<2x1xf32> to vector<2x128xf32>
        %77 = arith.mulf %72, %76 : vector<2x128xf32>
        %78 = arith.truncf %77 : vector<2x128xf32> to vector<2x128xbf16>
        %c0_38 = arith.constant 0 : index
        %c0_39 = arith.constant 0 : index
        %79 = vector.load %arg6[%c0_38, %c0_39] : memref<128x256xbf16, #tpu.memory_space<vmem>>, vector<128x256xbf16>
        %cst_40 = arith.constant dense<0.000000e+00> : vector<2x256xf32>
        %80 = tpu.matmul %78, %79, %cst_40 {dimension_numbers = #tpu.dot_dimension_numbers<[1], [0], [0], [1], [0, 0, 1, 1], [], []>} : vector<2x128xbf16>, vector<128x256xbf16>, vector<2x256xf32> -> vector<2x256xf32>
        %81 = vector.extract_strided_slice %13 {offsets = [3, 0], sizes = [1, 256], strides = [1, 1]} : vector<8x256xf32> to vector<1x256xf32>
        %82 = vector.broadcast %81 : vector<1x256xf32> to vector<2x256xf32>
        %83 = arith.addf %80, %82 : vector<2x256xf32>
        %84 = arith.truncf %83 : vector<2x256xf32> to vector<2x256xbf16>
        %c0_41 = arith.constant 0 : index
        %c0_42 = arith.constant 0 : index
        %85 = vector.load %arg7[%c0_41, %c0_42] : memref<256x128xbf16, #tpu.memory_space<vmem>>, vector<256x128xbf16>
        %cst_43 = arith.constant dense<0.000000e+00> : vector<2x128xf32>
        %86 = tpu.matmul %84, %85, %cst_43 {dimension_numbers = #tpu.dot_dimension_numbers<[1], [0], [0], [1], [0, 0, 1, 1], [], []>} : vector<2x256xbf16>, vector<256x128xbf16>, vector<2x128xf32> -> vector<2x128xf32>
        %87 = vector.extract_strided_slice %13 {offsets = [4, 0], sizes = [1, 128], strides = [1, 1]} : vector<8x256xf32> to vector<1x128xf32>
        %88 = vector.broadcast %87 : vector<1x128xf32> to vector<2x128xf32>
        %89 = arith.addf %86, %88 : vector<2x128xf32>
        %c0_44 = arith.constant 0 : index
        %c0_45 = arith.constant 0 : index
        %90 = vector.load %arg9[%c0_44, %c0_45] : memref<2x128xf32, #tpu.memory_space<vmem>>, vector<2x128xf32>
        tpu.vector_store %arg9[%c0_44, %c0_45], %89 {strides = array<i32>} : memref<2x128xf32, #tpu.memory_space<vmem>>, vector<2x128xf32>,
      } else {
      }
    } else {
    }
    return
  }
  func.func @transform_0(%arg0: i32, %arg1: i32) -> (i32, i32) {
    %c1_i32 = arith.constant 1 : i32
    %0 = arith.muli %arg0, %c1_i32 : i32
    %1 = arith.addi %0, %arg1 : i32
    %c0_i32 = arith.constant 0 : i32
    %c0_i32_0 = arith.constant 0 : i32
    return %c0_i32, %1 : i32, i32
  }
  func.func @transform_1(%arg0: i32, %arg1: i32) -> (i32, i32) {
    %c0_i32 = arith.constant 0 : i32
    %c0_i32_0 = arith.constant 0 : i32
    return %arg1, %c0_i32 : i32, i32
  }
  func.func @transform_2(%arg0: i32, %arg1: i32) -> (i32, i32) {
    %c0_i32 = arith.constant 0 : i32
    %c0_i32_0 = arith.constant 0 : i32
    %c0_i32_1 = arith.constant 0 : i32
    return %c0_i32, %c0_i32_0 : i32, i32
  }
  func.func @transform_3(%arg0: i32, %arg1: i32) -> (i32, i32) {
    %c0_i32 = arith.constant 0 : i32
    %c0_i32_0 = arith.constant 0 : i32
    %c0_i32_1 = arith.constant 0 : i32
    return %c0_i32, %c0_i32_0 : i32, i32
  }
  func.func @transform_4(%arg0: i32, %arg1: i32) -> (i32, i32) {
    %c0_i32 = arith.constant 0 : i32
    %c0_i32_0 = arith.constant 0 : i32
    %c0_i32_1 = arith.constant 0 : i32
    return %c0_i32, %c0_i32_0 : i32, i32
  }
  func.func @transform_5(%arg0: i32, %arg1: i32) -> (i32, i32) {
    %c0_i32 = arith.constant 0 : i32
    %c0_i32_0 = arith.constant 0 : i32
    %c0_i32_1 = arith.constant 0 : i32
    return %c0_i32, %c0_i32_0 : i32, i32
  }
  func.func @transform_6(%arg0: i32, %arg1: i32) -> (i32, i32) {
    %c0_i32 = arith.constant 0 : i32
    %c0_i32_0 = arith.constant 0 : i32
    %c0_i32_1 = arith.constant 0 : i32
    return %c0_i32, %c0_i32_0 : i32, i32
  }
  func.func @transform_7(%arg0: i32, %arg1: i32) -> (i32, i32) {
    %c0_i32 = arith.constant 0 : i32
    %c0_i32_0 = arith.constant 0 : i32
    %c0_i32_1 = arith.constant 0 : i32
    return %c0_i32, %c0_i32_0 : i32, i32
  }
}

</mosaic_0001>

<llo_original>
// kernel: tpu_custom_call.1
$region0: #{tpu_custom_call.1}
  #allocation0 [shape = 'u32[]', space=smem, size = 0x4, offset = 0x4, fixed_abs, tag = 'smem constant byte address 0x4 - core index']
  #allocation1 [shape = 'u32[144,128]{1,0:T(1,128)}', space=vmem, size = 0x12000, scoped, tag = 'internal scratch']
  #allocation2 [shape = 'f32[2,128]{1,0:T(2,128)}', space=vmem, size = 0x400, scoped, tag = 'scratch operand']
  #allocation3 [shape = 'f32[2,128]{1,0:T(2,128)}', space=vmem, size = 0x400, scoped, tag = 'scratch operand']
  %s0 = inlined_call_operand.hbm [shape: f32[2,1536], index: 0, kind: input, shape index: {}]
  %s1 = inlined_call_operand.hbm [shape: bf16[512,128], index: 1, kind: input, shape index: {}]
  %s2 = inlined_call_operand.hbm [shape: bf16[128,128], index: 2, kind: input, shape index: {}]
  %s3 = inlined_call_operand.hbm [shape: bf16[128,128], index: 3, kind: input, shape index: {}]
  %s4 = inlined_call_operand.hbm [shape: bf16[128,256], index: 4, kind: input, shape index: {}]
  %s5 = inlined_call_operand.hbm [shape: bf16[256,128], index: 5, kind: input, shape index: {}]
  %s6 = inlined_call_operand.hbm [shape: f32[8,256], index: 6, kind: input, shape index: {}]
  %s7 = inlined_call_operand.hbm [shape: f32[2,128], index: 7, kind: output, shape index: {}]
  %s8 = sld [smem:[#allocation0]]
  $region109: #{tpu_custom_call.1} parent=0
    _
  %s10 = ssub.s32 1, %s8
  %s11 = scalar_select 0, %s10, %s8
  $region1: #{tpu_custom_call.1} parent=0
    #allocation4 [shape = 'u8[8192]{0}', space=vmem, size = 0x2000, scoped, tag = 'input window, operand 0']
    #allocation5 [shape = 's32[2]{0}', space=sflag, size = 0x8, scoped, tag = 'scoped memory for tpu_custom_call.1']
    #allocation6 [shape = 's32[2]{0}', space=sflag, size = 0x8, scoped, tag = 'scoped memory for tpu_custom_call.1']
    #allocation7 [shape = 'u8[131072]{0}', space=vmem, size = 0x20000, scoped, tag = 'input window, operand 1, single buffered']
    #allocation8 [shape = 's32[1]{0}', space=sflag, size = 0x4, scoped, tag = 'scoped memory for tpu_custom_call.1']
    #allocation9 [shape = 'u8[32768]{0}', space=vmem, size = 0x8000, scoped, tag = 'input window, operand 2, single buffered']
    #allocation10 [shape = 'u8[32768]{0}', space=vmem, size = 0x8000, scoped, tag = 'input window, operand 3, single buffered']
    #allocation11 [shape = 's32[1]{0}', space=sflag, size = 0x4, scoped, tag = 'scoped memory for tpu_custom_call.1']
    #allocation12 [shape = 'u8[65536]{0}', space=vmem, size = 0x10000, scoped, tag = 'input window, operand 4, single buffered']
    #allocation13 [shape = 'u8[65536]{0}', space=vmem, size = 0x10000, scoped, tag = 'input window, operand 5, single buffered']
    #allocation14 [shape = 's32[1]{0}', space=sflag, size = 0x4, scoped, tag = 'scoped memory for tpu_custom_call.1']
    #allocation15 [shape = 'u8[8192]{0}', space=vmem, size = 0x2000, scoped, tag = 'input window, operand 6, single buffered']
    #allocation16 [shape = 'u8[1024]{0}', space=vmem, size = 0x400, scoped, tag = 'output window, operand 0, single buffered']
    %12 = vsyncpa [#allocation5], 0
    %s13 = scalar_lea.sflag [#allocation5], 1
    %14 = vsyncpa %s13, 0
    %15 = vsyncpa [#allocation8], 0
    %16 = vsyncpa [#allocation11], 0
    %17 = vsyncpa [#allocation14], 0
    %18 = vsyncpa [#allocation6], 0
    loop: start=0, step=1, limit=5
    $region2: #{tpu_custom_call.1} parent=1 // loop_pre_header
      _
    $region3: #{tpu_custom_call.1} parent=1 // loop_header
      %s20 = sphi 0, %s24
      %p21 = scmp.ge.s32.totalorder %s20, 5
      %s27 = sphi 0, %s39
      %s28 = sphi 0, %s35
      %s29 = sphi 0, %s27
      %s30 = sphi 0, %s28
      %s31 = sphi 0, %s29
      %s32 = sphi 0, %s30
      %s44 = sphi 0, %s46
      %s47 = sphi 0, %s44
      %s48 = sphi 0, %s47
      %s64 = sphi 0, %s48
      %s70 = sphi 0, %s72
      %s73 = sphi 0, %s70
      %s74 = sphi 0, %s73
      %s90 = sphi 0, %s74
      %s94 = sphi 0, %s94
      %s96 = sphi 0, %s94
      %s97 = sphi 0, %s96
      %s111 = sphi 0, %s97
      %s115 = sphi 0, %s115
      %s117 = sphi 0, %s115
      %s118 = sphi 0, %s117
      %s132 = sphi 0, %s118
      %s136 = sphi 0, %s136
      %s138 = sphi 0, %s136
      %s139 = sphi 0, %s138
      %s153 = sphi 0, %s139
      %s157 = sphi 0, %s157
      %s159 = sphi 0, %s157
      %s160 = sphi 0, %s159
      %s174 = sphi 0, %s160
      %s178 = sphi 0, %s178
      %s180 = sphi 0, %s178
      %s181 = sphi 0, %s180
      %s195 = sphi 0, %s181
      %s199 = sphi 0, %s199
      %s201 = sphi 0, %s199
      %s202 = sphi 0, %s201
      %s216 = sphi 0, %s202
    $region4: #{tpu_custom_call.1} parent=1 // loop_header_branch
      %23 = sbr.rel (%p21) target = $region8
    $region5: #{tpu_custom_call.1} parent=1 // loop_body
      %s25 = ssub.s32 %s20, 1
      %s26 = ssub.s32 %s20, 2
      %s33 = sadd.s32 1, %s28
      %p34 = scmp.ge.s32.totalorder %s33, 1
      %s35 = scalar_select %p34, 0, %s33
      %s36 = sadd.s32 1, %s27
      %s37 = scalar_select %p34, %s36, %s27
      %p38 = scmp.ge.s32.totalorder %s37, 3
      %s39 = scalar_select %p38, 0, %s37
      %s40 = sadd.s32 %s27, %s28
      %s41 = sadd.s32 %s39, %s35
      %s42 = ssub.s32 %s40, %s41
      %p43 = scmp.eq.s32.totalorder %s42, 0
      %s45 = sadd.s32 %s44, 1
      %s46 = scalar_select %p43, %s44, %s45
      %p49 = pneg %p43
      %p50 = scmp.eq.s32.totalorder %s20, 2
      %p51 = por %p49, %p50
      %p52 = scmp.ne.s32.totalorder %s44, %s47
      %p53 = scmp.eq.s32.totalorder %s20, 0
      %p54 = por %p52, %p53
      %p55 = scmp.ne.s32.totalorder %s44, %s47
      %p56 = scmp.eq.s32.totalorder %s25, 2
      %p57 = por %p55, %p56
      %p58 = scmp.ne.s32.totalorder %s47, %s48
      %p59 = scmp.eq.s32.totalorder %s25, 0
      %p60 = por %p58, %p59
      %p61 = scmp.ne.s32.totalorder %s47, %s48
      %p62 = scmp.eq.s32.totalorder %s26, 2
      %p63 = por %p61, %p62
      %p65 = scmp.ne.s32.totalorder %s48, %s64
      %p66 = scmp.eq.s32.totalorder %s26, 0
      %p67 = por %p65, %p66
      %s68 = ssub.s32 %s28, %s35
      %p69 = scmp.eq.s32.totalorder %s68, 0
      %s71 = sadd.s32 %s70, 1
      %s72 = scalar_select %p69, %s70, %s71
      %p75 = pneg %p69
      %p76 = scmp.eq.s32.totalorder %s20, 2
      %p77 = por %p75, %p76
      %p78 = scmp.ne.s32.totalorder %s70, %s73
      %p79 = scmp.eq.s32.totalorder %s20, 0
      %p80 = por %p78, %p79
      %p81 = scmp.ne.s32.totalorder %s70, %s73
      %p82 = scmp.eq.s32.totalorder %s25, 2
      %p83 = por %p81, %p82
      %p84 = scmp.ne.s32.totalorder %s73, %s74
      %p85 = scmp.eq.s32.totalorder %s25, 0
      %p86 = por %p84, %p85
      %p87 = scmp.ne.s32.totalorder %s73, %s74
      %p88 = scmp.eq.s32.totalorder %s26, 2
      %p89 = por %p87, %p88
      %p91 = scmp.ne.s32.totalorder %s74, %s90
      %p92 = scmp.eq.s32.totalorder %s26, 0
      %p93 = por %p91, %p92
      %s95 = sadd.s32 %s94, 1
      %p98 = scmp.eq.s32.totalorder %s20, 2
      %p99 = scmp.ne.s32.totalorder %s94, %s96
      %p100 = scmp.eq.s32.totalorder %s20, 0
      %p101 = por %p99, %p100
      %p102 = scmp.ne.s32.totalorder %s94, %s96
      %p103 = scmp.eq.s32.totalorder %s25, 2
      %p104 = por %p102, %p103
      %p105 = scmp.ne.s32.totalorder %s96, %s97
      %p106 = scmp.eq.s32.totalorder %s25, 0
      %p107 = por %p105, %p106
      %p108 = scmp.ne.s32.totalorder %s96, %s97
      %p109 = scmp.eq.s32.totalorder %s26, 2
      %p110 = por %p108, %p109
      %p112 = scmp.ne.s32.totalorder %s97, %s111
      %p113 = scmp.eq.s32.totalorder %s26, 0
      %p114 = por %p112, %p113
      %s116 = sadd.s32 %s115, 1
      %p119 = scmp.eq.s32.totalorder %s20, 2
      %p120 = scmp.ne.s32.totalorder %s115, %s117
      %p121 = scmp.eq.s32.totalorder %s20, 0
      %p122 = por %p120, %p121
      %p123 = scmp.ne.s32.totalorder %s115, %s117
      %p124 = scmp.eq.s32.totalorder %s25, 2
      %p125 = por %p123, %p124
      %p126 = scmp.ne.s32.totalorder %s117, %s118
      %p127 = scmp.eq.s32.totalorder %s25, 0
      %p128 = por %p126, %p127
      %p129 = scmp.ne.s32.totalorder %s117, %s118
      %p130 = scmp.eq.s32.totalorder %s26, 2
      %p131 = por %p129, %p130
      %p133 = scmp.ne.s32.totalorder %s118, %s132
      %p134 = scmp.eq.s32.totalorder %s26, 0
      %p135 = por %p133, %p134
      %s137 = sadd.s32 %s136, 1
      %p140 = scmp.eq.s32.totalorder %s20, 2
      %p141 = scmp.ne.s32.totalorder %s136, %s138
      %p142 = scmp.eq.s32.totalorder %s20, 0
      %p143 = por %p141, %p142
      %p144 = scmp.ne.s32.totalorder %s136, %s138
      %p145 = scmp.eq.s32.totalorder %s25, 2
      %p146 = por %p144, %p145
      %p147 = scmp.ne.s32.totalorder %s138, %s139
      %p148 = scmp.eq.s32.totalorder %s25, 0
      %p149 = por %p147, %p148
      %p150 = scmp.ne.s32.totalorder %s138, %s139
      %p151 = scmp.eq.s32.totalorder %s26, 2
      %p152 = por %p150, %p151
      %p154 = scmp.ne.s32.totalorder %s139, %s153
      %p155 = scmp.eq.s32.totalorder %s26, 0
      %p156 = por %p154, %p155
      %s158 = sadd.s32 %s157, 1
      %p161 = scmp.eq.s32.totalorder %s20, 2
      %p162 = scmp.ne.s32.totalorder %s157, %s159
      %p163 = scmp.eq.s32.totalorder %s20, 0
      %p164 = por %p162, %p163
      %p165 = scmp.ne.s32.totalorder %s157, %s159
      %p166 = scmp.eq.s32.totalorder %s25, 2
      %p167 = por %p165, %p166
      %p168 = scmp.ne.s32.totalorder %s159, %s160
      %p169 = scmp.eq.s32.totalorder %s25, 0
      %p170 = por %p168, %p169
      %p171 = scmp.ne.s32.totalorder %s159, %s160
      %p172 = scmp.eq.s32.totalorder %s26, 2
      %p173 = por %p171, %p172
      %p175 = scmp.ne.s32.totalorder %s160, %s174
      %p176 = scmp.eq.s32.totalorder %s26, 0
      %p177 = por %p175, %p176
      %s179 = sadd.s32 %s178, 1
      %p182 = scmp.eq.s32.totalorder %s20, 2
      %p183 = scmp.ne.s32.totalorder %s178, %s180
      %p184 = scmp.eq.s32.totalorder %s20, 0
      %p185 = por %p183, %p184
      %p186 = scmp.ne.s32.totalorder %s178, %s180
      %p187 = scmp.eq.s32.totalorder %s25, 2
      %p188 = por %p186, %p187
      %p189 = scmp.ne.s32.totalorder %s180, %s181
      %p190 = scmp.eq.s32.totalorder %s25, 0
      %p191 = por %p189, %p190
      %p192 = scmp.ne.s32.totalorder %s180, %s181
      %p193 = scmp.eq.s32.totalorder %s26, 2
      %p194 = por %p192, %p193
      %p196 = scmp.ne.s32.totalorder %s181, %s195
      %p197 = scmp.eq.s32.totalorder %s26, 0
      %p198 = por %p196, %p197
      %s200 = sadd.s32 %s199, 1
      %p203 = scmp.eq.s32.totalorder %s20, 2
      %p204 = scmp.ne.s32.totalorder %s199, %s201
      %p205 = scmp.eq.s32.totalorder %s20, 0
      %p206 = por %p204, %p205
      %p207 = scmp.ne.s32.totalorder %s199, %s201
      %p208 = scmp.eq.s32.totalorder %s25, 2
      %p209 = por %p207, %p208
      %p210 = scmp.ne.s32.totalorder %s201, %s202
      %p211 = scmp.eq.s32.totalorder %s25, 0
      %p212 = por %p210, %p211
      %p213 = scmp.ne.s32.totalorder %s201, %s202
      %p214 = scmp.eq.s32.totalorder %s26, 2
      %p215 = por %p213, %p214
      %p217 = scmp.ne.s32.totalorder %s202, %s216
      %p218 = scmp.eq.s32.totalorder %s26, 0
      %p219 = por %p217, %p218
      %p220 = scmp.le.s32.totalorder 1, %s20
      %p221 = scmp.lt.s32.totalorder %s20, 4
      %p222 = pnand %p220, %p221
      %p223 = pneg %p222
      // Predicated region
      $region9: #{tpu_custom_call.1} parent=5 // pred_check
        _
      $region10: #{tpu_custom_call.1} parent=5 // pred_check_branch
        %225 = sbr.rel (%p222) target = $region12
      $region11: #{tpu_custom_call.1} parent=5 // pred_region
        %s226 = ssub.s32 %s20, 1
        // Predicated region
        $region13: #{tpu_custom_call.1} parent=11 // pred_check
          %p227 = pneg %p86
        $region14: #{tpu_custom_call.1} parent=11 // pred_check_branch
          %229 = sbr.rel (%p227) target = $region16
        $region15: #{tpu_custom_call.1} parent=11 // pred_region
          %s230 = smul.u32 64, %s30
          %s232 = ssub.s32 4096, 4096
          %233 = vsyncadd [#allocation8], %s232
          %s234 = smul.addr %s230, 64
          %s235 = scalar_lea.hbm %s1, %s234
          %s236 = sshll.u32 [#allocation7], 4
          %s237 = int_to_ptr.vmem [resolvable:$true] %s236
          %242 = dma.hbm_to_vmem [thread:$0]  %s235, 4096, %s237, [#allocation8], 64, 64, 4
        $region16: #{tpu_custom_call.1} parent=11 // pred_fallthru
          _
        // Predicated region
        $region17: #{tpu_custom_call.1} parent=11 // pred_check
          %p243 = pneg %p107
        $region18: #{tpu_custom_call.1} parent=11 // pred_check_branch
          %245 = sbr.rel (%p243) target = $region20
        $region19: #{tpu_custom_call.1} parent=11 // pred_region
          %s247 = ssub.s32 1024, 1024
          %248 = vsyncadd [#allocation8], %s247
          %s249 = sshll.u32 [#allocation9], 4
          %s250 = int_to_ptr.vmem [resolvable:$true] %s249
          %255 = dma.hbm_to_vmem [thread:$0]  %s2, 1024, %s250, [#allocation8], 64, 64, 4
        $region20: #{tpu_custom_call.1} parent=11 // pred_fallthru
          _
        // Predicated region
        $region21: #{tpu_custom_call.1} parent=11 // pred_check
          %p256 = pneg %p128
        $region22: #{tpu_custom_call.1} parent=11 // pred_check_branch
          %258 = sbr.rel (%p256) target = $region24
        $region23: #{tpu_custom_call.1} parent=11 // pred_region
          %s260 = ssub.s32 1024, 1024
          %261 = vsyncadd [#allocation11], %s260
          %s262 = sshll.u32 [#allocation10], 4
          %s263 = int_to_ptr.vmem [resolvable:$true] %s262
          %268 = dma.hbm_to_vmem [thread:$0]  %s3, 1024, %s263, [#allocation11], 64, 64, 4
        $region24: #{tpu_custom_call.1} parent=11 // pred_fallthru
          _
        // Predicated region
        $region25: #{tpu_custom_call.1} parent=11 // pred_check
          %p269 = pneg %p149
        $region26: #{tpu_custom_call.1} parent=11 // pred_check_branch
          %271 = sbr.rel (%p269) target = $region28
        $region27: #{tpu_custom_call.1} parent=11 // pred_region
          %s273 = ssub.s32 2048, 2048
          %274 = vsyncadd [#allocation11], %s273
          %s275 = sshll.u32 [#allocation12], 4
          %s276 = int_to_ptr.vmem [resolvable:$true] %s275
          %281 = dma.hbm_to_vmem [thread:$0]  %s4, 2048, %s276, [#allocation11], 128, 128, 8
        $region28: #{tpu_custom_call.1} parent=11 // pred_fallthru
          _
        // Predicated region
        $region29: #{tpu_custom_call.1} parent=11 // pred_check
          %p282 = pneg %p170
        $region30: #{tpu_custom_call.1} parent=11 // pred_check_branch
          %284 = sbr.rel (%p282) target = $region32
        $region31: #{tpu_custom_call.1} parent=11 // pred_region
          %s286 = ssub.s32 2048, 2048
          %287 = vsyncadd [#allocation14], %s286
          %s288 = sshll.u32 [#allocation13], 4
          %s289 = int_to_ptr.vmem [resolvable:$true] %s288
          %294 = dma.hbm_to_vmem [thread:$0]  %s5, 2048, %s289, [#allocation14], 64, 64, 4
        $region32: #{tpu_custom_call.1} parent=11 // pred_fallthru
          _
        // Predicated region
        $region33: #{tpu_custom_call.1} parent=11 // pred_check
          %p295 = pneg %p191
        $region34: #{tpu_custom_call.1} parent=11 // pred_check_branch
          %297 = sbr.rel (%p295) target = $region36
        $region35: #{tpu_custom_call.1} parent=11 // pred_region
          %s299 = ssub.s32 256, 256
          %300 = vsyncadd [#allocation14], %s299
          %s302 = sshll.u32 [#allocation15], 4
          %s303 = int_to_ptr.vmem [resolvable:$true] %s302
          %305 = dma.hbm_to_vmem [thread:$0]  %s6, 256, %s303, [#allocation14]
        $region36: #{tpu_custom_call.1} parent=11 // pred_fallthru
          _
      $region12: #{tpu_custom_call.1} parent=5 // pred_fallthru
        _
      %p306 = scmp.lt.s32.totalorder %s20, 3
      // Predicated region
      $region37: #{tpu_custom_call.1} parent=5 // pred_check
        %p307 = pneg %p306
      $region38: #{tpu_custom_call.1} parent=5 // pred_check_branch
        %309 = sbr.rel (%p307) target = $region40
      $region39: #{tpu_custom_call.1} parent=5 // pred_region
        // Predicated region
        $region41: #{tpu_custom_call.1} parent=39 // pred_check
          %p310 = pneg %p54
        $region42: #{tpu_custom_call.1} parent=39 // pred_check_branch
          %312 = sbr.rel (%p310) target = $region44
        $region43: #{tpu_custom_call.1} parent=39 // pred_region
          %s313 = sand.u32 %s44, 1
          %s314 = scalar_lea.sflag [#allocation5], %s313
          %s315 = sand.u32 %s44, 1
          %s316 = smul.addr %s315, 8
          %s317 = scalar_lea.vmem [#allocation4], %s316
          %s318 = sadd.s32 %s27, %s28
          %s319 = smul.u32 4, %s318
          %s321 = ssub.s32 128, 128
          %322 = vsyncadd %s314, %s321
          %s323 = smul.addr %s319, 32
          %s324 = scalar_lea.hbm %s0, %s323
          %s326 = sshll.u32 %s317, 4
          %s327 = int_to_ptr.vmem [resolvable:$true] %s326
          %329 = dma.hbm_to_vmem [thread:$0]  %s324, 128, %s327, %s314
        $region44: #{tpu_custom_call.1} parent=39 // pred_fallthru
          _
      $region40: #{tpu_custom_call.1} parent=5 // pred_fallthru
        _
      %p330 = scmp.le.s32.totalorder 1, %s20
      %p331 = scmp.lt.s32.totalorder %s20, 4
      %p332 = pnand %p330, %p331
      %p333 = pneg %p332
      // Predicated region
      $region45: #{tpu_custom_call.1} parent=5 // pred_check
        _
      $region46: #{tpu_custom_call.1} parent=5 // pred_check_branch
        %335 = sbr.rel (%p332) target = $region48
      $region47: #{tpu_custom_call.1} parent=5 // pred_region
        %s336 = ssub.s32 %s20, 1
        %s337 = sand.u32 %s47, 1
        %s338 = scalar_lea.sflag [#allocation5], %s337
        %s339 = sand.u32 %s47, 1
        %s340 = smul.addr %s339, 8
        %s341 = scalar_lea.vmem [#allocation4], %s340
        // Predicated region
        $region49: #{tpu_custom_call.1} parent=47 // pred_check
          %p342 = pneg %p60
        $region50: #{tpu_custom_call.1} parent=47 // pred_check_branch
          %344 = sbr.rel (%p342) target = $region52
        $region51: #{tpu_custom_call.1} parent=47 // pred_region
          %345 = dma.done %s338, 128
        $region52: #{tpu_custom_call.1} parent=47 // pred_fallthru
          _
        // Predicated region
        $region53: #{tpu_custom_call.1} parent=47 // pred_check
          %p346 = pneg %p86
        $region54: #{tpu_custom_call.1} parent=47 // pred_check_branch
          %348 = sbr.rel (%p346) target = $region56
        $region55: #{tpu_custom_call.1} parent=47 // pred_region
          %349 = dma.done [#allocation8], 4096
        $region56: #{tpu_custom_call.1} parent=47 // pred_fallthru
          _
        // Predicated region
        $region57: #{tpu_custom_call.1} parent=47 // pred_check
          %p350 = pneg %p107
        $region58: #{tpu_custom_call.1} parent=47 // pred_check_branch
          %352 = sbr.rel (%p350) target = $region60
        $region59: #{tpu_custom_call.1} parent=47 // pred_region
          %353 = dma.done [#allocation8], 1024
        $region60: #{tpu_custom_call.1} parent=47 // pred_fallthru
          _
        // Predicated region
        $region61: #{tpu_custom_call.1} parent=47 // pred_check
          %p354 = pneg %p128
        $region62: #{tpu_custom_call.1} parent=47 // pred_check_branch
          %356 = sbr.rel (%p354) target = $region64
        $region63: #{tpu_custom_call.1} parent=47 // pred_region
          %357 = dma.done [#allocation11], 1024
        $region64: #{tpu_custom_call.1} parent=47 // pred_fallthru
          _
        // Predicated region
        $region65: #{tpu_custom_call.1} parent=47 // pred_check
          %p358 = pneg %p149
        $region66: #{tpu_custom_call.1} parent=47 // pred_check_branch
          %360 = sbr.rel (%p358) target = $region68
        $region67: #{tpu_custom_call.1} parent=47 // pred_region
          %361 = dma.done [#allocation11], 2048
        $region68: #{tpu_custom_call.1} parent=47 // pred_fallthru
          _
        // Predicated region
        $region69: #{tpu_custom_call.1} parent=47 // pred_check
          %p362 = pneg %p170
        $region70: #{tpu_custom_call.1} parent=47 // pred_check_branch
          %364 = sbr.rel (%p362) target = $region72
        $region71: #{tpu_custom_call.1} parent=47 // pred_region
          %365 = dma.done [#allocation14], 2048
        $region72: #{tpu_custom_call.1} parent=47 // pred_fallthru
          _
        // Predicated region
        $region73: #{tpu_custom_call.1} parent=47 // pred_check
          %p366 = pneg %p191
        $region74: #{tpu_custom_call.1} parent=47 // pred_check_branch
          %368 = sbr.rel (%p366) target = $region76
        $region75: #{tpu_custom_call.1} parent=47 // pred_region
          %369 = dma.done [#allocation14], 256
        $region76: #{tpu_custom_call.1} parent=47 // pred_fallthru
          _
        %s370 = sand.u32 %s47, 1
        %s371 = scalar_lea.sflag [#allocation5], %s370
        %s372 = sand.u32 %s47, 1
        %s373 = smul.addr %s372, 8
        %s374 = scalar_lea.vmem [#allocation4], %s373
        %p375 = pneg %p60
        %p376 = pneg %p57
        %p377 = pneg %p86
        %p378 = pneg %p83
        %p379 = pneg %p107
        %p380 = pneg %p104
        %p381 = pneg %p128
        %p382 = pneg %p125
        %p383 = pneg %p149
        %p384 = pneg %p146
        %p385 = pneg %p170
        %p386 = pneg %p167
        %p387 = pneg %p191
        %p388 = pneg %p188
        %p389 = pneg %p212
        %p390 = pneg %p209
        %s391 = sadd.s32 %s29, %s30
        %s392 = smul.u32 4, %s391
        %s393 = smul.u32 64, %s30
        %p395 = scmp.eq.s32.totalorder %s30, 0
        // Predicated region
        $region77: #{tpu_custom_call.1} parent=47 // pred_check
          %p396 = pneg %p395
        $region78: #{tpu_custom_call.1} parent=47 // pred_check_branch
          %398 = sbr.rel (%p396) target = $region80
        $region79: #{tpu_custom_call.1} parent=47 // pred_region
          %399 = vst [vmem:[#allocation2] sm:$0x3] 0.0
        $region80: #{tpu_custom_call.1} parent=47 // pred_fallthru
          _
        %v400 = vld [vmem:[#allocation2] sm:$0x3]
        %v401 = vld [vmem:[%s341] sm:$0xff]
        %v403 = vcombine.high %v401, %v401
        %v405 = vunpack.c.l.s4 1983009808
        %v406 = vunpack.c.0.s8 %v405
        %v407 = vlaneseq
        %v408 = vshrl.u32 %v407, 7
        %v409 = vsub.s32 %v406, %v408
        %v410 = vrot.slane %v401, %v409
        %v412 = vunpack.c.l.s4 1983009808
        %v413 = vunpack.c.0.s8 %v412
        %v414 = vlaneseq
        %v415 = vshrl.u32 %v414, 7
        %v416 = vsub.s32 %v413, %v415
        %v417 = vrot.slane %v403, %v416
        %v418 = vcombine.high %v410, %v410
        %v419 = vcombine.high %v417, %v417
        %v424 = vpack.c.bf16 %v410, %v410
        %v425 = vpack.c.bf16 %v418, %v418
        %v426 = vpack.c.bf16 %v417, %v417
        %v427 = vpack.c.bf16 %v419, %v419
        %v428 = vld [vmem:[#allocation7] sm:$0xf]
        %v429 = vld [vmem:[#allocation7 + $0x4] sm:$0xf]
        %v430 = vld [vmem:[#allocation7 + $0x8] sm:$0xf]
        %v431 = vld [vmem:[#allocation7 + $0xc] sm:$0xf]
        %v432 = vld [vmem:[#allocation7 + $0x10] sm:$0xf]
        %v433 = vld [vmem:[#allocation7 + $0x14] sm:$0xf]
        %v434 = vld [vmem:[#allocation7 + $0x18] sm:$0xf]
        %v435 = vld [vmem:[#allocation7 + $0x1c] sm:$0xf]
        %v436 = vld [vmem:[#allocation7 + $0x20] sm:$0xf]
        %v437 = vld [vmem:[#allocation7 + $0x24] sm:$0xf]
        %v438 = vld [vmem:[#allocation7 + $0x28] sm:$0xf]
        %v439 = vld [vmem:[#allocation7 + $0x2c] sm:$0xf]
        %v440 = vld [vmem:[#allocation7 + $0x30] sm:$0xf]
        %v441 = vld [vmem:[#allocation7 + $0x34] sm:$0xf]
        %v442 = vld [vmem:[#allocation7 + $0x38] sm:$0xf]
        %v443 = vld [vmem:[#allocation7 + $0x3c] sm:$0xf]
        %v444 = vld [vmem:[#allocation7 + $0x40] sm:$0xf]
        %v445 = vld [vmem:[#allocation7 + $0x44] sm:$0xf]
        %v446 = vld [vmem:[#allocation7 + $0x48] sm:$0xf]
        %v447 = vld [vmem:[#allocation7 + $0x4c] sm:$0xf]
        %v448 = vld [vmem:[#allocation7 + $0x50] sm:$0xf]
        %v449 = vld [vmem:[#allocation7 + $0x54] sm:$0xf]
        %v450 = vld [vmem:[#allocation7 + $0x58] sm:$0xf]
        %v451 = vld [vmem:[#allocation7 + $0x5c] sm:$0xf]
        %v452 = vld [vmem:[#allocation7 + $0x60] sm:$0xf]
        %v453 = vld [vmem:[#allocation7 + $0x64] sm:$0xf]
        %v454 = vld [vmem:[#allocation7 + $0x68] sm:$0xf]
        %v455 = vld [vmem:[#allocation7 + $0x6c] sm:$0xf]
        %v456 = vld [vmem:[#allocation7 + $0x70] sm:$0xf]
        %v457 = vld [vmem:[#allocation7 + $0x74] sm:$0xf]
        %v458 = vld [vmem:[#allocation7 + $0x78] sm:$0xf]
        %v459 = vld [vmem:[#allocation7 + $0x7c] sm:$0xf]
        %v460 = vld [vmem:[#allocation7 + $0x80] sm:$0xf]
        %v461 = vld [vmem:[#allocation7 + $0x84] sm:$0xf]
        %v462 = vld [vmem:[#allocation7 + $0x88] sm:$0xf]
        %v463 = vld [vmem:[#allocation7 + $0x8c] sm:$0xf]
        %v464 = vld [vmem:[#allocation7 + $0x90] sm:$0xf]
        %v465 = vld [vmem:[#allocation7 + $0x94] sm:$0xf]
        %v466 = vld [vmem:[#allocation7 + $0x98] sm:$0xf]
        %v467 = vld [vmem:[#allocation7 + $0x9c] sm:$0xf]
        %v468 = vld [vmem:[#allocation7 + $0xa0] sm:$0xf]
        %v469 = vld [vmem:[#allocation7 + $0xa4] sm:$0xf]
        %v470 = vld [vmem:[#allocation7 + $0xa8] sm:$0xf]
        %v471 = vld [vmem:[#allocation7 + $0xac] sm:$0xf]
        %v472 = vld [vmem:[#allocation7 + $0xb0] sm:$0xf]
        %v473 = vld [vmem:[#allocation7 + $0xb4] sm:$0xf]
        %v474 = vld [vmem:[#allocation7 + $0xb8] sm:$0xf]
        %v475 = vld [vmem:[#allocation7 + $0xbc] sm:$0xf]
        %v476 = vld [vmem:[#allocation7 + $0xc0] sm:$0xf]
        %v477 = vld [vmem:[#allocation7 + $0xc4] sm:$0xf]
        %v478 = vld [vmem:[#allocation7 + $0xc8] sm:$0xf]
        %v479 = vld [vmem:[#allocation7 + $0xcc] sm:$0xf]
        %v480 = vld [vmem:[#allocation7 + $0xd0] sm:$0xf]
        %v481 = vld [vmem:[#allocation7 + $0xd4] sm:$0xf]
        %v482 = vld [vmem:[#allocation7 + $0xd8] sm:$0xf]
        %v483 = vld [vmem:[#allocation7 + $0xdc] sm:$0xf]
        %v484 = vld [vmem:[#allocation7 + $0xe0] sm:$0xf]
        %v485 = vld [vmem:[#allocation7 + $0xe4] sm:$0xf]
        %v486 = vld [vmem:[#allocation7 + $0xe8] sm:$0xf]
        %v487 = vld [vmem:[#allocation7 + $0xec] sm:$0xf]
        %v488 = vld [vmem:[#allocation7 + $0xf0] sm:$0xf]
        %v489 = vld [vmem:[#allocation7 + $0xf4] sm:$0xf]
        %v490 = vld [vmem:[#allocation7 + $0xf8] sm:$0xf]
        %v491 = vld [vmem:[#allocation7 + $0xfc] sm:$0xf]
        %v556 = vunpack.c.l.b16 %v428
        %v557 = vunpack.c.l.b16 %v429
        %v558 = vunpack.c.l.b16 %v430
        %v559 = vunpack.c.l.b16 %v431
        %v560 = vunpack.c.l.b16 %v432
        %v561 = vunpack.c.l.b16 %v433
        %v562 = vunpack.c.l.b16 %v434
        %v563 = vunpack.c.l.b16 %v435
        %v564 = vunpack.c.l.b16 %v436
        %v565 = vunpack.c.l.b16 %v437
        %v566 = vunpack.c.l.b16 %v438
        %v567 = vunpack.c.l.b16 %v439
        %v568 = vunpack.c.l.b16 %v440
        %v569 = vunpack.c.l.b16 %v441
        %v570 = vunpack.c.l.b16 %v442
        %v571 = vunpack.c.l.b16 %v443
        %v572 = vunpack.c.l.b16 %v444
        %v573 = vunpack.c.l.b16 %v445
        %v574 = vunpack.c.l.b16 %v446
        %v575 = vunpack.c.l.b16 %v447
        %v576 = vunpack.c.l.b16 %v448
        %v577 = vunpack.c.l.b16 %v449
        %v578 = vunpack.c.l.b16 %v450
        %v579 = vunpack.c.l.b16 %v451
        %v580 = vunpack.c.l.b16 %v452
        %v581 = vunpack.c.l.b16 %v453
        %v582 = vunpack.c.l.b16 %v454
        %v583 = vunpack.c.l.b16 %v455
        %v584 = vunpack.c.l.b16 %v456
        %v585 = vunpack.c.l.b16 %v457
        %v586 = vunpack.c.l.b16 %v458
        %v587 = vunpack.c.l.b16 %v459
        %v588 = vunpack.c.l.b16 %v460
        %v589 = vunpack.c.l.b16 %v461
        %v590 = vunpack.c.l.b16 %v462
        %v591 = vunpack.c.l.b16 %v463
        %v592 = vunpack.c.l.b16 %v464
        %v593 = vunpack.c.l.b16 %v465
        %v594 = vunpack.c.l.b16 %v466
        %v595 = vunpack.c.l.b16 %v467
        %v596 = vunpack.c.l.b16 %v468
        %v597 = vunpack.c.l.b16 %v469
        %v598 = vunpack.c.l.b16 %v470
        %v599 = vunpack.c.l.b16 %v471
        %v600 = vunpack.c.l.b16 %v472
        %v601 = vunpack.c.l.b16 %v473
        %v602 = vunpack.c.l.b16 %v474
        %v603 = vunpack.c.l.b16 %v475
        %v604 = vunpack.c.l.b16 %v476
        %v605 = vunpack.c.l.b16 %v477
        %v606 = vunpack.c.l.b16 %v478
        %v607 = vunpack.c.l.b16 %v479
        %v608 = vunpack.c.l.b16 %v480
        %v609 = vunpack.c.l.b16 %v481
        %v610 = vunpack.c.l.b16 %v482
        %v611 = vunpack.c.l.b16 %v483
        %v612 = vunpack.c.l.b16 %v484
        %v613 = vunpack.c.l.b16 %v485
        %v614 = vunpack.c.l.b16 %v486
        %v615 = vunpack.c.l.b16 %v487
        %v616 = vunpack.c.l.b16 %v488
        %v617 = vunpack.c.l.b16 %v489
        %v618 = vunpack.c.l.b16 %v490
        %v619 = vunpack.c.l.b16 %v491
        %v620 = vpack.c.b16 %v557, %v556
        %v621 = vpack.c.b16 %v559, %v558
        %v622 = vpack.c.b16 %v561, %v560
        %v623 = vpack.c.b16 %v563, %v562
        %v624 = vpack.c.b16 %v565, %v564
        %v625 = vpack.c.b16 %v567, %v566
        %v626 = vpack.c.b16 %v569, %v568
        %v627 = vpack.c.b16 %v571, %v570
        %v628 = vpack.c.b16 %v573, %v572
        %v629 = vpack.c.b16 %v575, %v574
        %v630 = vpack.c.b16 %v577, %v576
        %v631 = vpack.c.b16 %v579, %v578
        %v632 = vpack.c.b16 %v581, %v580
        %v633 = vpack.c.b16 %v583, %v582
        %v634 = vpack.c.b16 %v585, %v584
        %v635 = vpack.c.b16 %v587, %v586
        %v636 = vpack.c.b16 %v589, %v588
        %v637 = vpack.c.b16 %v591, %v590
        %v638 = vpack.c.b16 %v593, %v592
        %v639 = vpack.c.b16 %v595, %v594
        %v640 = vpack.c.b16 %v597, %v596
        %v641 = vpack.c.b16 %v599, %v598
        %v642 = vpack.c.b16 %v601, %v600
        %v643 = vpack.c.b16 %v603, %v602
        %v644 = vpack.c.b16 %v605, %v604
        %v645 = vpack.c.b16 %v607, %v606
        %v646 = vpack.c.b16 %v609, %v608
        %v647 = vpack.c.b16 %v611, %v610
        %v648 = vpack.c.b16 %v613, %v612
        %v649 = vpack.c.b16 %v615, %v614
        %v650 = vpack.c.b16 %v617, %v616
        %v651 = vpack.c.b16 %v619, %v618
        %684 = vmatprep.subr.bf16.mxu0 0
        %685 = vmatpush1.bf16.msra.mxu0 %v627
        %686 = vmatprep.subr.bf16.mxu0 0
        %687 = vmatpush1.bf16.msra.mxu0 %v626
        %688 = vmatprep.subr.bf16.mxu0 0
        %689 = vmatpush1.bf16.msra.mxu0 %v625
        %690 = vmatprep.subr.bf16.mxu0 0
        %691 = vmatpush1.bf16.msra.mxu0 %v624
        %692 = vmatprep.subr.bf16.mxu0 0
        %693 = vmatpush1.bf16.msra.mxu0 %v623
        %694 = vmatprep.subr.bf16.mxu0 0
        %695 = vmatpush1.bf16.msra.mxu0 %v622
        %696 = vmatprep.subr.bf16.mxu0 0
        %697 = vmatpush1.bf16.msra.mxu0 %v621
        %698 = vmatprep.subr.bf16.mxu0 0
        %699 = vmatpush1.bf16.msra.mxu0 %v620
        %700 = vmatprep.subr.bf16.mxu0 0
        %701 = vmatpush2.bf16.msra.mxu0 %v635
        %702 = vmatprep.subr.bf16.mxu0 0
        %703 = vmatpush2.bf16.msra.mxu0 %v634
        %704 = vmatprep.subr.bf16.mxu0 0
        %705 = vmatpush2.bf16.msra.mxu0 %v633
        %706 = vmatprep.subr.bf16.mxu0 0
        %707 = vmatpush2.bf16.msra.mxu0 %v632
        %708 = vmatprep.subr.bf16.mxu0 0
        %709 = vmatpush2.bf16.msra.mxu0 %v631
        %710 = vmatprep.subr.bf16.mxu0 0
        %711 = vmatpush2.bf16.msra.mxu0 %v630
        %712 = vmatprep.subr.bf16.mxu0 0
        %713 = vmatpush2.bf16.msra.mxu0 %v629
        %714 = vmatprep.subr.bf16.mxu0 0
        %715 = vmatpush2.bf16.msra.mxu0 %v628
        %716 = vmatprep.mubr.bf16.mxu0 %v425
        %717 = vmatmul.mubr.bf16.gmra.mxu0 %v424
        %v718 = vpop.f32.mrf.mxu0
        %v719 = vadd.f32 0.0, %v718
        %v720 = vpop.f32.mrf.mxu0
        %v721 = vpop.f32.mrf.mxu0
        %v722 = vpop.f32.mrf.mxu0
        %723 = vdwg.mxu0
        %724 = vmatprep.subr.bf16.mxu0 0
        %725 = vmatpush1.bf16.msra.mxu0 %v643
        %726 = vmatprep.subr.bf16.mxu0 0
        %727 = vmatpush1.bf16.msra.mxu0 %v642
        %728 = vmatprep.subr.bf16.mxu0 0
        %729 = vmatpush1.bf16.msra.mxu0 %v641
        %730 = vmatprep.subr.bf16.mxu0 0
        %731 = vmatpush1.bf16.msra.mxu0 %v640
        %732 = vmatprep.subr.bf16.mxu0 0
        %733 = vmatpush1.bf16.msra.mxu0 %v639
        %734 = vmatprep.subr.bf16.mxu0 0
        %735 = vmatpush1.bf16.msra.mxu0 %v638
        %736 = vmatprep.subr.bf16.mxu0 0
        %737 = vmatpush1.bf16.msra.mxu0 %v637
        %738 = vmatprep.subr.bf16.mxu0 0
        %739 = vmatpush1.bf16.msra.mxu0 %v636
        %740 = vmatprep.subr.bf16.mxu0 0
        %741 = vmatpush2.bf16.msra.mxu0 %v651
        %742 = vmatprep.subr.bf16.mxu0 0
        %743 = vmatpush2.bf16.msra.mxu0 %v650
        %744 = vmatprep.subr.bf16.mxu0 0
        %745 = vmatpush2.bf16.msra.mxu0 %v649
        %746 = vmatprep.subr.bf16.mxu0 0
        %747 = vmatpush2.bf16.msra.mxu0 %v648
        %748 = vmatprep.subr.bf16.mxu0 0
        %749 = vmatpush2.bf16.msra.mxu0 %v647
        %750 = vmatprep.subr.bf16.mxu0 0
        %751 = vmatpush2.bf16.msra.mxu0 %v646
        %752 = vmatprep.subr.bf16.mxu0 0
        %753 = vmatpush2.bf16.msra.mxu0 %v645
        %754 = vmatprep.subr.bf16.mxu0 0
        %755 = vmatpush2.bf16.msra.mxu0 %v644
        %756 = vmatprep.mubr.bf16.mxu0 %v427
        %757 = vmatmul.mubr.bf16.gmra.mxu0 %v426
        %v758 = vpop.f32.mrf.mxu0
        %v759 = vadd.f32 %v719, %v758
        %v760 = vpop.f32.mrf.mxu0
        %v761 = vpop.f32.mrf.mxu0
        %v762 = vpop.f32.mrf.mxu0
        %763 = vdwg.mxu0
        %v764 = vadd.f32 %v400, %v759
        %765 = vst [vmem:[#allocation2] sm:$0x3] %v764
        // Predicated region
        $region81: #{tpu_custom_call.1} parent=47 // pred_check
          %p766 = pneg %p395
        $region82: #{tpu_custom_call.1} parent=47 // pred_check_branch
          %768 = sbr.rel (%p766) target = $region84
        $region83: #{tpu_custom_call.1} parent=47 // pred_region
          %v769 = vld [vmem:[#allocation15] sm:$0xff]
          %v770 = vld [vmem:[#allocation15 + $0x8] sm:$0xff]
          %v771 = vld [vmem:[#allocation2] sm:$0x3]
          %v772 = vlaneseq
          %v773 = vshrl.u32 %v772, 7
          %v774 = vsub.s32 0, %v773
          %v775 = vrot.slane %v769, %v774
          %v776 = vadd.f32 %v771, %v775
          %v777 = vmax.f32 %v776, 0.0
          %p778 = scmp.eq.s32.totalorder %s29, 0
          // Predicated region
          $region85: #{tpu_custom_call.1} parent=83 // pred_check
            %p779 = pneg %p778
          $region86: #{tpu_custom_call.1} parent=83 // pred_check_branch
            %781 = sbr.rel (%p779) target = $region88
          $region87: #{tpu_custom_call.1} parent=83 // pred_region
            %782 = vst [vmem:[#allocation3] sm:$0x3] %v777
          $region88: #{tpu_custom_call.1} parent=83 // pred_fallthru
            _
          %p783 = scmp.gt.s32.totalorder %s29, 0
          // Predicated region
          $region89: #{tpu_custom_call.1} parent=83 // pred_check
            %p784 = pneg %p783
          $region90: #{tpu_custom_call.1} parent=83 // pred_check_branch
            %786 = sbr.rel (%p784) target = $region92
          $region91: #{tpu_custom_call.1} parent=83 // pred_region
            %v787 = vld [vmem:[#allocation3] sm:$0x3]
            %v788 = vmax.f32 %v787, %v777
            %789 = vst [vmem:[#allocation3] sm:$0x3] %v788
          $region92: #{tpu_custom_call.1} parent=83 // pred_fallthru
            _
          %p790 = scmp.eq.s32.totalorder %s29, 2
          // Predicated region
          $region93: #{tpu_custom_call.1} parent=83 // pred_check
            %p791 = pneg %p790
          $region94: #{tpu_custom_call.1} parent=83 // pred_check_branch
            %793 = sbr.rel (%p791) target = $region96
          $region95: #{tpu_custom_call.1} parent=83 // pred_region
            %v794 = vld [vmem:[#allocation3] sm:$0x3]
            %vm795 = vcmask 1041408
            %v796 = vsel %vm795, %v794, 0.0
            %797 = vadd.xlane.f32.xlu0 %v796
            %v798 = vpop.xlane.xlu0 %797
            %v799 = vrcp.pop 128.0
            %v800 = vmul.f32 %v798, %v799
            %v801 = vsub.f32 %v794, %v800
            %v802 = vmul.f32 %v801, %v801
            %v803 = vsel %vm795, %v802, 0.0
            %804 = vadd.xlane.f32.xlu0 %v803
            %v805 = vpop.xlane.xlu0 %804
            %v806 = vmul.f32 %v805, %v799
            %v807 = vadd.f32 %v806, 1e-05
            %v808 = vrsqrt.pop %v807
            %v809 = vmul.f32 %v801, %v808
            %v810 = vpack.c.bf16 %v809, %v809
            %v811 = vld [vmem:[#allocation9] sm:$0xf]
            %v812 = vld [vmem:[#allocation9 + $0x4] sm:$0xf]
            %v813 = vld [vmem:[#allocation9 + $0x8] sm:$0xf]
            %v814 = vld [vmem:[#allocation9 + $0xc] sm:$0xf]
            %v815 = vld [vmem:[#allocation9 + $0x10] sm:$0xf]
            %v816 = vld [vmem:[#allocation9 + $0x14] sm:$0xf]
            %v817 = vld [vmem:[#allocation9 + $0x18] sm:$0xf]
            %v818 = vld [vmem:[#allocation9 + $0x1c] sm:$0xf]
            %v819 = vld [vmem:[#allocation9 + $0x20] sm:$0xf]
            %v820 = vld [vmem:[#allocation9 + $0x24] sm:$0xf]
            %v821 = vld [vmem:[#allocation9 + $0x28] sm:$0xf]
            %v822 = vld [vmem:[#allocation9 + $0x2c] sm:$0xf]
            %v823 = vld [vmem:[#allocation9 + $0x30] sm:$0xf]
            %v824 = vld [vmem:[#allocation9 + $0x34] sm:$0xf]
            %v825 = vld [vmem:[#allocation9 + $0x38] sm:$0xf]
            %v826 = vld [vmem:[#allocation9 + $0x3c] sm:$0xf]
            %v827 = vlaneseq
            %v828 = vshrl.u32 %v827, 7
            %v829 = vsub.s32 1, %v828
            %v830 = vrot.slane %v769, %v829
            %v847 = vunpack.c.l.b16 %v811
            %v848 = vunpack.c.l.b16 %v812
            %v849 = vunpack.c.l.b16 %v813
            %v850 = vunpack.c.l.b16 %v814
            %v851 = vunpack.c.l.b16 %v815
            %v852 = vunpack.c.l.b16 %v816
            %v853 = vunpack.c.l.b16 %v817
            %v854 = vunpack.c.l.b16 %v818
            %v855 = vunpack.c.l.b16 %v819
            %v856 = vunpack.c.l.b16 %v820
            %v857 = vunpack.c.l.b16 %v821
            %v858 = vunpack.c.l.b16 %v822
            %v859 = vunpack.c.l.b16 %v823
            %v860 = vunpack.c.l.b16 %v824
            %v861 = vunpack.c.l.b16 %v825
            %v862 = vunpack.c.l.b16 %v826
            %v863 = vpack.c.b16 %v848, %v847
            %v864 = vpack.c.b16 %v850, %v849
            %v865 = vpack.c.b16 %v852, %v851
            %v866 = vpack.c.b16 %v854, %v853
            %v867 = vpack.c.b16 %v856, %v855
            %v868 = vpack.c.b16 %v858, %v857
            %v869 = vpack.c.b16 %v860, %v859
            %v870 = vpack.c.b16 %v862, %v861
            %879 = vmatprep.subr.bf16.mxu0 0
            %880 = vmatpush1.bf16.msra.mxu0 %v870
            %881 = vmatprep.subr.bf16.mxu0 0
            %882 = vmatpush1.bf16.msra.mxu0 %v869
            %883 = vmatprep.subr.bf16.mxu0 0
            %884 = vmatpush1.bf16.msra.mxu0 %v868
            %885 = vmatprep.subr.bf16.mxu0 0
            %886 = vmatpush1.bf16.msra.mxu0 %v867
            %887 = vmatprep.subr.bf16.mxu0 0
            %888 = vmatpush1.bf16.msra.mxu0 %v866
            %889 = vmatprep.subr.bf16.mxu0 0
            %890 = vmatpush1.bf16.msra.mxu0 %v865
            %891 = vmatprep.subr.bf16.mxu0 0
            %892 = vmatpush1.bf16.msra.mxu0 %v864
            %893 = vmatprep.subr.bf16.mxu0 0
            %894 = vmatpush1.bf16.msra.mxu0 %v863
            %895 = vmatprep.subr.bf16.mxu0 0
            %896 = vmatpush2.bf16.msra.mxu0 0
            %897 = vmatprep.subr.bf16.mxu0 0
            %898 = vmatpush2.bf16.msra.mxu0 0
            %899 = vmatprep.subr.bf16.mxu0 0
            %900 = vmatpush2.bf16.msra.mxu0 0
            %901 = vmatprep.subr.bf16.mxu0 0
            %902 = vmatpush2.bf16.msra.mxu0 0
            %903 = vmatprep.subr.bf16.mxu0 0
            %904 = vmatpush2.bf16.msra.mxu0 0
            %905 = vmatprep.subr.bf16.mxu0 0
            %906 = vmatpush2.bf16.msra.mxu0 0
            %907 = vmatprep.subr.bf16.mxu0 0
            %908 = vmatpush2.bf16.msra.mxu0 0
            %909 = vmatprep.subr.bf16.mxu0 0
            %910 = vmatpush2.bf16.msra.mxu0 0
            %911 = vmatprep.mubr.bf16.mxu0 0
            %912 = vmatmul.mubr.bf16.gmra.mxu0 %v810
            %v913 = vpop.f32.mrf.mxu0
            %v914 = vadd.f32 %v830, %v913
            %v915 = vpop.f32.mrf.mxu0
            %v916 = vpop.f32.mrf.mxu0
            %v917 = vpop.f32.mrf.mxu0
            %918 = vdwg.mxu0
            %v919 = vpack.c.bf16 %v914, %v914
            %v920 = vld [vmem:[#allocation10] sm:$0xf]
            %v921 = vld [vmem:[#allocation10 + $0x4] sm:$0xf]
            %v922 = vld [vmem:[#allocation10 + $0x8] sm:$0xf]
            %v923 = vld [vmem:[#allocation10 + $0xc] sm:$0xf]
            %v924 = vld [vmem:[#allocation10 + $0x10] sm:$0xf]
            %v925 = vld [vmem:[#allocation10 + $0x14] sm:$0xf]
            %v926 = vld [vmem:[#allocation10 + $0x18] sm:$0xf]
            %v927 = vld [vmem:[#allocation10 + $0x1c] sm:$0xf]
            %v928 = vld [vmem:[#allocation10 + $0x20] sm:$0xf]
            %v929 = vld [vmem:[#allocation10 + $0x24] sm:$0xf]
            %v930 = vld [vmem:[#allocation10 + $0x28] sm:$0xf]
            %v931 = vld [vmem:[#allocation10 + $0x2c] sm:$0xf]
            %v932 = vld [vmem:[#allocation10 + $0x30] sm:$0xf]
            %v933 = vld [vmem:[#allocation10 + $0x34] sm:$0xf]
            %v934 = vld [vmem:[#allocation10 + $0x38] sm:$0xf]
            %v935 = vld [vmem:[#allocation10 + $0x3c] sm:$0xf]
            %v936 = vlaneseq
            %v937 = vshrl.u32 %v936, 7
            %v938 = vsub.s32 2, %v937
            %v939 = vrot.slane %v769, %v938
            %v956 = vunpack.c.l.b16 %v920
            %v957 = vunpack.c.l.b16 %v921
            %v958 = vunpack.c.l.b16 %v922
            %v959 = vunpack.c.l.b16 %v923
            %v960 = vunpack.c.l.b16 %v924
            %v961 = vunpack.c.l.b16 %v925
            %v962 = vunpack.c.l.b16 %v926
            %v963 = vunpack.c.l.b16 %v927
            %v964 = vunpack.c.l.b16 %v928
            %v965 = vunpack.c.l.b16 %v929
            %v966 = vunpack.c.l.b16 %v930
            %v967 = vunpack.c.l.b16 %v931
            %v968 = vunpack.c.l.b16 %v932
            %v969 = vunpack.c.l.b16 %v933
            %v970 = vunpack.c.l.b16 %v934
            %v971 = vunpack.c.l.b16 %v935
            %v972 = vpack.c.b16 %v957, %v956
            %v973 = vpack.c.b16 %v959, %v958
            %v974 = vpack.c.b16 %v961, %v960
            %v975 = vpack.c.b16 %v963, %v962
            %v976 = vpack.c.b16 %v965, %v964
            %v977 = vpack.c.b16 %v967, %v966
            %v978 = vpack.c.b16 %v969, %v968
            %v979 = vpack.c.b16 %v971, %v970
            %988 = vmatprep.subr.bf16.mxu0 0
            %989 = vmatpush1.bf16.msra.mxu0 %v979
            %990 = vmatprep.subr.bf16.mxu0 0
            %991 = vmatpush1.bf16.msra.mxu0 %v978
            %992 = vmatprep.subr.bf16.mxu0 0
            %993 = vmatpush1.bf16.msra.mxu0 %v977
            %994 = vmatprep.subr.bf16.mxu0 0
            %995 = vmatpush1.bf16.msra.mxu0 %v976
            %996 = vmatprep.subr.bf16.mxu0 0
            %997 = vmatpush1.bf16.msra.mxu0 %v975
            %998 = vmatprep.subr.bf16.mxu0 0
            %999 = vmatpush1.bf16.msra.mxu0 %v974
            %1000 = vmatprep.subr.bf16.mxu0 0
            %1001 = vmatpush1.bf16.msra.mxu0 %v973
            %1002 = vmatprep.subr.bf16.mxu0 0
            %1003 = vmatpush1.bf16.msra.mxu0 %v972
            %1004 = vmatprep.subr.bf16.mxu0 0
            %1005 = vmatpush2.bf16.msra.mxu0 0
            %1006 = vmatprep.subr.bf16.mxu0 0
            %1007 = vmatpush2.bf16.msra.mxu0 0
            %1008 = vmatprep.subr.bf16.mxu0 0
            %1009 = vmatpush2.bf16.msra.mxu0 0
            %1010 = vmatprep.subr.bf16.mxu0 0
            %1011 = vmatpush2.bf16.msra.mxu0 0
            %1012 = vmatprep.subr.bf16.mxu0 0
            %1013 = vmatpush2.bf16.msra.mxu0 0
            %1014 = vmatprep.subr.bf16.mxu0 0
            %1015 = vmatpush2.bf16.msra.mxu0 0
            %1016 = vmatprep.subr.bf16.mxu0 0
            %1017 = vmatpush2.bf16.msra.mxu0 0
            %1018 = vmatprep.subr.bf16.mxu0 0
            %1019 = vmatpush2.bf16.msra.mxu0 0
            %1020 = vmatprep.mubr.bf16.mxu0 0
            %1021 = vmatmul.mubr.bf16.gmra.mxu0 %v919
            %v1022 = vpop.f32.mrf.mxu0
            %v1023 = vadd.f32 %v939, %v1022
            %v1024 = vpop.f32.mrf.mxu0
            %v1025 = vpop.f32.mrf.mxu0
            %v1026 = vpop.f32.mrf.mxu0
            %1027 = vdwg.mxu0
            %v1028 = vsel %vm795, %v1023, 0.0
            %1029 = vadd.xlane.f32.xlu0 %v1028
            %v1030 = vpop.xlane.xlu0 %1029
            %v1031 = vmul.f32 %v1030, %v799
            %v1032 = vsub.f32 %v1023, %v1031
            %v1033 = vmul.f32 %v1032, %v1032
            %v1034 = vsel %vm795, %v1033, 0.0
            %1035 = vadd.xlane.f32.xlu0 %v1034
            %v1036 = vpop.xlane.xlu0 %1035
            %v1037 = vmul.f32 %v1036, %v799
            %v1038 = vadd.f32 %v1037, 1e-05
            %v1039 = vrsqrt.pop %v1038
            %v1040 = vmul.f32 %v1032, %v1039
            %v1041 = vpack.c.bf16 %v1040, %v1040
            %v1042 = vld [vmem:[#allocation12] sm:$0xff]
            %v1043 = vld [vmem:[#allocation12 + $0x8] sm:$0xff]
            %v1044 = vld [vmem:[#allocation12 + $0x10] sm:$0xff]
            %v1045 = vld [vmem:[#allocation12 + $0x18] sm:$0xff]
            %v1046 = vld [vmem:[#allocation12 + $0x20] sm:$0xff]
            %v1047 = vld [vmem:[#allocation12 + $0x28] sm:$0xff]
            %v1048 = vld [vmem:[#allocation12 + $0x30] sm:$0xff]
            %v1049 = vld [vmem:[#allocation12 + $0x38] sm:$0xff]
            %v1050 = vld [vmem:[#allocation12 + $0x40] sm:$0xff]
            %v1051 = vld [vmem:[#allocation12 + $0x48] sm:$0xff]
            %v1052 = vld [vmem:[#allocation12 + $0x50] sm:$0xff]
            %v1053 = vld [vmem:[#allocation12 + $0x58] sm:$0xff]
            %v1054 = vld [vmem:[#allocation12 + $0x60] sm:$0xff]
            %v1055 = vld [vmem:[#allocation12 + $0x68] sm:$0xff]
            %v1056 = vld [vmem:[#allocation12 + $0x70] sm:$0xff]
            %v1057 = vld [vmem:[#allocation12 + $0x78] sm:$0xff]
            %v1058 = vlaneseq
            %v1059 = vshrl.u32 %v1058, 7
            %v1060 = vsub.s32 3, %v1059
            %v1061 = vrot.slane %v769, %v1060
            %v1062 = vlaneseq
            %v1063 = vshrl.u32 %v1062, 7
            %v1064 = vsub.s32 3, %v1063
            %v1065 = vrot.slane %v770, %v1064
            %v1082 = vunpack.c.l.b16 %v1042
            %v1083 = vunpack.c.h.b16 %v1042
            %v1084 = vunpack.c.l.b16 %v1043
            %v1085 = vunpack.c.h.b16 %v1043
            %v1086 = vunpack.c.l.b16 %v1044
            %v1087 = vunpack.c.h.b16 %v1044
            %v1088 = vunpack.c.l.b16 %v1045
            %v1089 = vunpack.c.h.b16 %v1045
            %v1090 = vunpack.c.l.b16 %v1046
            %v1091 = vunpack.c.h.b16 %v1046
            %v1092 = vunpack.c.l.b16 %v1047
            %v1093 = vunpack.c.h.b16 %v1047
            %v1094 = vunpack.c.l.b16 %v1048
            %v1095 = vunpack.c.h.b16 %v1048
            %v1096 = vunpack.c.l.b16 %v1049
            %v1097 = vunpack.c.h.b16 %v1049
            %v1098 = vunpack.c.l.b16 %v1050
            %v1099 = vunpack.c.h.b16 %v1050
            %v1100 = vunpack.c.l.b16 %v1051
            %v1101 = vunpack.c.h.b16 %v1051
            %v1102 = vunpack.c.l.b16 %v1052
            %v1103 = vunpack.c.h.b16 %v1052
            %v1104 = vunpack.c.l.b16 %v1053
            %v1105 = vunpack.c.h.b16 %v1053
            %v1106 = vunpack.c.l.b16 %v1054
            %v1107 = vunpack.c.h.b16 %v1054
            %v1108 = vunpack.c.l.b16 %v1055
            %v1109 = vunpack.c.h.b16 %v1055
            %v1110 = vunpack.c.l.b16 %v1056
            %v1111 = vunpack.c.h.b16 %v1056
            %v1112 = vunpack.c.l.b16 %v1057
            %v1113 = vunpack.c.h.b16 %v1057
            %v1114 = vpack.c.b16 %v1084, %v1082
            %v1115 = vpack.c.b16 %v1085, %v1083
            %v1116 = vpack.c.b16 %v1088, %v1086
            %v1117 = vpack.c.b16 %v1089, %v1087
            %v1118 = vpack.c.b16 %v1092, %v1090
            %v1119 = vpack.c.b16 %v1093, %v1091
            %v1120 = vpack.c.b16 %v1096, %v1094
            %v1121 = vpack.c.b16 %v1097, %v1095
            %v1122 = vpack.c.b16 %v1100, %v1098
            %v1123 = vpack.c.b16 %v1101, %v1099
            %v1124 = vpack.c.b16 %v1104, %v1102
            %v1125 = vpack.c.b16 %v1105, %v1103
            %v1126 = vpack.c.b16 %v1108, %v1106
            %v1127 = vpack.c.b16 %v1109, %v1107
            %v1128 = vpack.c.b16 %v1112, %v1110
            %v1129 = vpack.c.b16 %v1113, %v1111
            %1146 = vmatprep.subr.bf16.mxu0 %v1129
            %1147 = vmatpush1.bf16.msra.mxu0 %v1128
            %1148 = vmatprep.subr.bf16.mxu0 %v1127
            %1149 = vmatpush1.bf16.msra.mxu0 %v1126
            %1150 = vmatprep.subr.bf16.mxu0 %v1125
            %1151 = vmatpush1.bf16.msra.mxu0 %v1124
            %1152 = vmatprep.subr.bf16.mxu0 %v1123
            %1153 = vmatpush1.bf16.msra.mxu0 %v1122
            %1154 = vmatprep.subr.bf16.mxu0 %v1121
            %1155 = vmatpush1.bf16.msra.mxu0 %v1120
            %1156 = vmatprep.subr.bf16.mxu0 %v1119
            %1157 = vmatpush1.bf16.msra.mxu0 %v1118
            %1158 = vmatprep.subr.bf16.mxu0 %v1117
            %1159 = vmatpush1.bf16.msra.mxu0 %v1116
            %1160 = vmatprep.subr.bf16.mxu0 %v1115
            %1161 = vmatpush1.bf16.msra.mxu0 %v1114
            %1162 = vmatprep.subr.bf16.mxu0 0
            %1163 = vmatpush2.bf16.msra.mxu0 0
            %1164 = vmatprep.subr.bf16.mxu0 0
            %1165 = vmatpush2.bf16.msra.mxu0 0
            %1166 = vmatprep.subr.bf16.mxu0 0
            %1167 = vmatpush2.bf16.msra.mxu0 0
            %1168 = vmatprep.subr.bf16.mxu0 0
            %1169 = vmatpush2.bf16.msra.mxu0 0
            %1170 = vmatprep.subr.bf16.mxu0 0
            %1171 = vmatpush2.bf16.msra.mxu0 0
            %1172 = vmatprep.subr.bf16.mxu0 0
            %1173 = vmatpush2.bf16.msra.mxu0 0
            %1174 = vmatprep.subr.bf16.mxu0 0
            %1175 = vmatpush2.bf16.msra.mxu0 0
            %1176 = vmatprep.subr.bf16.mxu0 0
            %1177 = vmatpush2.bf16.msra.mxu0 0
            %1178 = vmatprep.mubr.bf16.mxu0 0
            %1179 = vmatmul.mubr.bf16.gmra.mxu0 %v1041
            %v1180 = vpop.f32.mrf.mxu0
            %v1181 = vadd.f32 %v1061, %v1180
            %v1182 = vpop.f32.mrf.mxu0
            %v1183 = vadd.f32 %v1065, %v1182
            %v1184 = vpop.f32.mrf.mxu0
            %v1185 = vpop.f32.mrf.mxu0
            %1186 = vdwg.mxu0
            %v1187 = vpack.c.bf16 %v1181, %v1181
            %v1188 = vpack.c.bf16 %v1183, %v1183
            %v1189 = vld [vmem:[#allocation13] sm:$0xf]
            %v1190 = vld [vmem:[#allocation13 + $0x4] sm:$0xf]
            %v1191 = vld [vmem:[#allocation13 + $0x8] sm:$0xf]
            %v1192 = vld [vmem:[#allocation13 + $0xc] sm:$0xf]
            %v1193 = vld [vmem:[#allocation13 + $0x10] sm:$0xf]
            %v1194 = vld [vmem:[#allocation13 + $0x14] sm:$0xf]
            %v1195 = vld [vmem:[#allocation13 + $0x18] sm:$0xf]
            %v1196 = vld [vmem:[#allocation13 + $0x1c] sm:$0xf]
            %v1197 = vld [vmem:[#allocation13 + $0x20] sm:$0xf]
            %v1198 = vld [vmem:[#allocation13 + $0x24] sm:$0xf]
            %v1199 = vld [vmem:[#allocation13 + $0x28] sm:$0xf]
            %v1200 = vld [vmem:[#allocation13 + $0x2c] sm:$0xf]
            %v1201 = vld [vmem:[#allocation13 + $0x30] sm:$0xf]
            %v1202 = vld [vmem:[#allocation13 + $0x34] sm:$0xf]
            %v1203 = vld [vmem:[#allocation13 + $0x38] sm:$0xf]
            %v1204 = vld [vmem:[#allocation13 + $0x3c] sm:$0xf]
            %v1205 = vld [vmem:[#allocation13 + $0x40] sm:$0xf]
            %v1206 = vld [vmem:[#allocation13 + $0x44] sm:$0xf]
            %v1207 = vld [vmem:[#allocation13 + $0x48] sm:$0xf]
            %v1208 = vld [vmem:[#allocation13 + $0x4c] sm:$0xf]
            %v1209 = vld [vmem:[#allocation13 + $0x50] sm:$0xf]
            %v1210 = vld [vmem:[#allocation13 + $0x54] sm:$0xf]
            %v1211 = vld [vmem:[#allocation13 + $0x58] sm:$0xf]
            %v1212 = vld [vmem:[#allocation13 + $0x5c] sm:$0xf]
            %v1213 = vld [vmem:[#allocation13 + $0x60] sm:$0xf]
            %v1214 = vld [vmem:[#allocation13 + $0x64] sm:$0xf]
            %v1215 = vld [vmem:[#allocation13 + $0x68] sm:$0xf]
            %v1216 = vld [vmem:[#allocation13 + $0x6c] sm:$0xf]
            %v1217 = vld [vmem:[#allocation13 + $0x70] sm:$0xf]
            %v1218 = vld [vmem:[#allocation13 + $0x74] sm:$0xf]
            %v1219 = vld [vmem:[#allocation13 + $0x78] sm:$0xf]
            %v1220 = vld [vmem:[#allocation13 + $0x7c] sm:$0xf]
            %v1221 = vlaneseq
            %v1222 = vshrl.u32 %v1221, 7
            %v1223 = vsub.s32 4, %v1222
            %v1224 = vrot.slane %v769, %v1223
            %v1257 = vunpack.c.l.b16 %v1189
            %v1258 = vunpack.c.l.b16 %v1190
            %v1259 = vunpack.c.l.b16 %v1191
            %v1260 = vunpack.c.l.b16 %v1192
            %v1261 = vunpack.c.l.b16 %v1193
            %v1262 = vunpack.c.l.b16 %v1194
            %v1263 = vunpack.c.l.b16 %v1195
            %v1264 = vunpack.c.l.b16 %v1196
            %v1265 = vunpack.c.l.b16 %v1197
            %v1266 = vunpack.c.l.b16 %v1198
            %v1267 = vunpack.c.l.b16 %v1199
            %v1268 = vunpack.c.l.b16 %v1200
            %v1269 = vunpack.c.l.b16 %v1201
            %v1270 = vunpack.c.l.b16 %v1202
            %v1271 = vunpack.c.l.b16 %v1203
            %v1272 = vunpack.c.l.b16 %v1204
            %v1273 = vunpack.c.l.b16 %v1205
            %v1274 = vunpack.c.l.b16 %v1206
            %v1275 = vunpack.c.l.b16 %v1207
            %v1276 = vunpack.c.l.b16 %v1208
            %v1277 = vunpack.c.l.b16 %v1209
            %v1278 = vunpack.c.l.b16 %v1210
            %v1279 = vunpack.c.l.b16 %v1211
            %v1280 = vunpack.c.l.b16 %v1212
            %v1281 = vunpack.c.l.b16 %v1213
            %v1282 = vunpack.c.l.b16 %v1214
            %v1283 = vunpack.c.l.b16 %v1215
            %v1284 = vunpack.c.l.b16 %v1216
            %v1285 = vunpack.c.l.b16 %v1217
            %v1286 = vunpack.c.l.b16 %v1218
            %v1287 = vunpack.c.l.b16 %v1219
            %v1288 = vunpack.c.l.b16 %v1220
            %v1289 = vpack.c.b16 %v1258, %v1257
            %v1290 = vpack.c.b16 %v1260, %v1259
            %v1291 = vpack.c.b16 %v1262, %v1261
            %v1292 = vpack.c.b16 %v1264, %v1263
            %v1293 = vpack.c.b16 %v1266, %v1265
            %v1294 = vpack.c.b16 %v1268, %v1267
            %v1295 = vpack.c.b16 %v1270, %v1269
            %v1296 = vpack.c.b16 %v1272, %v1271
            %v1297 = vpack.c.b16 %v1274, %v1273
            %v1298 = vpack.c.b16 %v1276, %v1275
            %v1299 = vpack.c.b16 %v1278, %v1277
            %v1300 = vpack.c.b16 %v1280, %v1279
            %v1301 = vpack.c.b16 %v1282, %v1281
            %v1302 = vpack.c.b16 %v1284, %v1283
            %v1303 = vpack.c.b16 %v1286, %v1285
            %v1304 = vpack.c.b16 %v1288, %v1287
            %1321 = vmatprep.subr.bf16.mxu0 0
            %1322 = vmatpush1.bf16.msra.mxu0 %v1296
            %1323 = vmatprep.subr.bf16.mxu0 0
            %1324 = vmatpush1.bf16.msra.mxu0 %v1295
            %1325 = vmatprep.subr.bf16.mxu0 0
            %1326 = vmatpush1.bf16.msra.mxu0 %v1294
            %1327 = vmatprep.subr.bf16.mxu0 0
            %1328 = vmatpush1.bf16.msra.mxu0 %v1293
            %1329 = vmatprep.subr.bf16.mxu0 0
            %1330 = vmatpush1.bf16.msra.mxu0 %v1292
            %1331 = vmatprep.subr.bf16.mxu0 0
            %1332 = vmatpush1.bf16.msra.mxu0 %v1291
            %1333 = vmatprep.subr.bf16.mxu0 0
            %1334 = vmatpush1.bf16.msra.mxu0 %v1290
            %1335 = vmatprep.subr.bf16.mxu0 0
            %1336 = vmatpush1.bf16.msra.mxu0 %v1289
            %1337 = vmatprep.subr.bf16.mxu0 0
            %1338 = vmatpush2.bf16.msra.mxu0 %v1304
            %1339 = vmatprep.subr.bf16.mxu0 0
            %1340 = vmatpush2.bf16.msra.mxu0 %v1303
            %1341 = vmatprep.subr.bf16.mxu0 0
            %1342 = vmatpush2.bf16.msra.mxu0 %v1302
            %1343 = vmatprep.subr.bf16.mxu0 0
            %1344 = vmatpush2.bf16.msra.mxu0 %v1301
            %1345 = vmatprep.subr.bf16.mxu0 0
            %1346 = vmatpush2.bf16.msra.mxu0 %v1300
            %1347 = vmatprep.subr.bf16.mxu0 0
            %1348 = vmatpush2.bf16.msra.mxu0 %v1299
            %1349 = vmatprep.subr.bf16.mxu0 0
            %1350 = vmatpush2.bf16.msra.mxu0 %v1298
            %1351 = vmatprep.subr.bf16.mxu0 0
            %1352 = vmatpush2.bf16.msra.mxu0 %v1297
            %1353 = vmatprep.mubr.bf16.mxu0 %v1188
            %1354 = vmatmul.mubr.bf16.gmra.mxu0 %v1187
            %v1355 = vpop.f32.mrf.mxu0
            %v1356 = vadd.f32 %v1224, %v1355
            %v1357 = vpop.f32.mrf.mxu0
            %v1358 = vpop.f32.mrf.mxu0
            %v1359 = vpop.f32.mrf.mxu0
            %1360 = vdwg.mxu0
            %1361 = vst [vmem:[#allocation16] sm:$0x3] %v1356
          $region96: #{tpu_custom_call.1} parent=83 // pred_fallthru
            _
        $region84: #{tpu_custom_call.1} parent=47 // pred_fallthru
          _
        // Predicated region
        $region97: #{tpu_custom_call.1} parent=47 // pred_check
          %p1362 = pneg %p209
        $region98: #{tpu_custom_call.1} parent=47 // pred_check_branch
          %1364 = sbr.rel (%p1362) target = $region100
        $region99: #{tpu_custom_call.1} parent=47 // pred_region
          %s1366 = ssub.s32 32, 32
          %1367 = vsyncadd [#allocation6], %s1366
          %s1369 = sshll.u32 [#allocation16], 4
          %s1370 = int_to_ptr.vmem [resolvable:$true] %s1369
          %1372 = dma.vmem_to_hbm [thread:$0]  %s1370, 32, %s7, [#allocation6]
        $region100: #{tpu_custom_call.1} parent=47 // pred_fallthru
          _
        // Predicated region
        $region101: #{tpu_custom_call.1} parent=47 // pred_check
          %p1373 = pneg %p209
        $region102: #{tpu_custom_call.1} parent=47 // pred_check_branch
          %1375 = sbr.rel (%p1373) target = $region104
        $region103: #{tpu_custom_call.1} parent=47 // pred_region
          %1376 = dma.done [#allocation6], 32
        $region104: #{tpu_custom_call.1} parent=47 // pred_fallthru
          _
      $region48: #{tpu_custom_call.1} parent=5 // pred_fallthru
        _
      %p1377 = scmp.le.s32.totalorder 2, %s20
      // Predicated region
      $region105: #{tpu_custom_call.1} parent=5 // pred_check
        %p1378 = pneg %p1377
      $region106: #{tpu_custom_call.1} parent=5 // pred_check_branch
        %1380 = sbr.rel (%p1378) target = $region108
      $region107: #{tpu_custom_call.1} parent=5 // pred_region
        %s1381 = ssub.s32 %s20, 2
      $region108: #{tpu_custom_call.1} parent=5 // pred_fallthru
        _
    $region6: #{tpu_custom_call.1} parent=1 // loop_footer
      %s24 = sadd.s32 1, %s20
    $region7: #{tpu_custom_call.1} parent=1 // loop_footer_branch
      %19 = sbr.rel target = $region3
    $region8: #{tpu_custom_call.1} parent=1 // loop_exit
      _
    %1382 = vsyncpa [#allocation5], 1
    %s1383 = scalar_lea.sflag [#allocation5], 1
    %1384 = vsyncpa %s1383, 1
    %1385 = vsyncpa [#allocation8], 1
    %1386 = vsyncpa [#allocation11], 1
    %1387 = vsyncpa [#allocation14], 1
    %1388 = vsyncpa [#allocation6], 1
    %s1389 = scalar_lea.sflag [#allocation6], 1
    %1390 = vsyncpa %s1389, 1

</llo_original>
